<compile_context>
chip_gen: v7x
topology: tpu7x:2x2x1
jax: 0.10.0
libtpu: 0.0.40
codegen_flags: <defaults>
</compile_context>

<pallas_src>
import functools

import jax
import jax.numpy as jnp
from jax.experimental import pallas as pl
from jax.experimental.pallas import tpu as pltpu


def fnn_kernel(x_ref, w1_ref, b1_ref, w2_ref, b2_ref, w3_ref, b3_ref, o_ref):
    # x: (TB, 3072) f32 (cast to bf16 here, hidden under the x DMA)
    # w1: (3072, 64) bf16   w2: (64, 32) f32   w3: (32, C_pad) f32
    # biases: (1, N) f32 (b3 pad lanes carry -1e30)   o: (TB, C_pad) f32
    x = x_ref[...].astype(jnp.bfloat16)

    h1 = jnp.dot(x, w1_ref[...], preferred_element_type=jnp.float32) + b1_ref[...]
    h1 = jnp.tanh(h1)

    h2 = jnp.dot(h1, w2_ref[...], preferred_element_type=jnp.float32) + b2_ref[...]
    h2 = jnp.maximum(h2, 0.0)

    # pad-lane mask is pre-baked into b3 (-1e30), so exp underflows to 0 there
    logits = jnp.dot(h2, w3_ref[...], preferred_element_type=jnp.float32) + b3_ref[...]

    m = jnp.max(logits, axis=-1, keepdims=True)
    e = jnp.exp(logits - m)
    s = jnp.sum(e, axis=-1, keepdims=True)
    # exact divide so softmax rows sum to 1 within f32 rounding
    o_ref[...] = e / s


def fnn_forward(x_nchw, params, *, max_tb=512):
    w1, b1, w2, b2, w3, b3 = params
    B = x_nchw.shape[0]
    D = 3072
    num_classes = w3.shape[1]

    # stream f32 x directly; the bf16 cast happens in-kernel
    x = x_nchw.reshape(B, -1)                                # (B, 3072) f32
    w1b = w1.astype(jnp.bfloat16)

    # pad class dim to a full 128-lane output slab; mask baked into b3 padding
    C_pad = 128 * pl.cdiv(num_classes, 128)
    w3p = jnp.pad(w3, ((0, 0), (0, C_pad - num_classes)))
    b3p = jnp.pad(b3, ((0, 0), (0, C_pad - num_classes)),
                  constant_values=-1e30)

    # batch tiling: multiple of 16 rows (bf16 packing), capped for VMEM
    B16 = 16 * pl.cdiv(B, 16)
    if B16 > max_tb:
        TB = max_tb
    elif B16 % 32 == 0:
        TB = B16 // 2       # even grid -> both v7x TensorCores get work
    else:
        TB = B16
    Bp = TB * pl.cdiv(B16, TB)
    if Bp != B:
        x = jnp.pad(x, ((0, Bp - B), (0, 0)))
    nb = Bp // TB

    # weights/biases: full-array blocks, constant index_map -> resident in VMEM
    full = lambda a: pl.BlockSpec(a.shape, lambda i: (0,) * a.ndim)

    weight_bytes = sum(int(a.size) * a.dtype.itemsize
                       for a in (w1b, b1, w2, b2, w3p, b3p))
    cost = pl.CostEstimate(
        flops=2 * Bp * (D * 64 + 64 * 32 + 32 * C_pad),
        transcendentals=Bp * (64 + C_pad),
        bytes_accessed=Bp * D * 4 + weight_bytes + Bp * C_pad * 4,
    )

    out = pl.pallas_call(
        fnn_kernel,
        out_shape=jax.ShapeDtypeStruct((Bp, C_pad), jnp.float32),
        grid=(nb,),
        in_specs=[
            pl.BlockSpec((TB, D), lambda i: (i, 0)),   # x tile, pipelined
            full(w1b), full(b1), full(w2), full(b2), full(w3p), full(b3p),
        ],
        out_specs=pl.BlockSpec((TB, C_pad), lambda i: (i, 0)),
        compiler_params=pltpu.CompilerParams(
            dimension_semantics=("parallel",),
            vmem_limit_bytes=32 * 1024 * 1024,
        ),
        cost_estimate=cost,
    )(x, w1b, b1, w2, b2, w3p, b3p)

    return out[:B, :num_classes]


def init_params(key, num_classes):
    """Deterministic init matching nn.Linear's U(-1/sqrt(fan_in), 1/sqrt(fan_in))."""
    def linear(key, fan_in, fan_out):
        kw, kb = jax.random.split(key)
        bound = 1.0 / jnp.sqrt(fan_in)
        w = jax.random.uniform(kw, (fan_in, fan_out), jnp.float32, -bound, bound)
        b = jax.random.uniform(kb, (1, fan_out), jnp.float32, -bound, bound)
        return w, b

    k1, k2, k3 = jax.random.split(key, 3)
    w1, b1 = linear(k1, 3072, 64)
    w2, b2 = linear(k2, 64, 32)
    w3, b3 = linear(k3, 32, num_classes)
    return (w1, b1, w2, b2, w3, b3)


def reference_forward_f32(x_nchw, params):
    """Pure-f32 reference matching the PyTorch module exactly."""
    w1, b1, w2, b2, w3, b3 = params
    x = x_nchw.reshape(x_nchw.shape[0], -1).astype(jnp.float32)
    h1 = jnp.tanh(x @ w1 + b1)
    h2 = jax.nn.relu(h1 @ w2 + b2)
    return jax.nn.softmax(h2 @ w3 + b3, axis=1)


def reference_forward_matched(x_nchw, params):
    """Reference with the same bf16 x / w1 matmul and f32 accumulation."""
    w1, b1, w2, b2, w3, b3 = params
    x = x_nchw.reshape(x_nchw.shape[0], -1).astype(jnp.bfloat16)
    h1 = jnp.dot(x, w1.astype(jnp.bfloat16),
                 preferred_element_type=jnp.float32) + b1
    h1 = jnp.tanh(h1)
    h2 = jax.nn.relu(h1 @ w2 + b2)
    return jax.nn.softmax(h2 @ w3 + b3, axis=1)


if __name__ == "__main__":
    num_classes = 10
    key = jax.random.PRNGKey(0)
    kx, kp = jax.random.split(key)

    # CIFAR-like input: (B, 3, 32, 32) -> flattens to 3072 features
    x = jax.random.normal(kx, (2, 3, 32, 32), dtype=jnp.float32)
    params = init_params(kp, num_classes)

    out = fnn_forward(x, params)
    out = jax.block_until_ready(out)

    ref_matched = reference_forward_matched(x, params)
    ref_f32 = reference_forward_f32(x, params)

    assert out.shape == (2, num_classes)
    # tight vs. a reference using the same bf16 fc1 matmul
    assert jnp.allclose(out, ref_matched, atol=2e-3), "mismatch vs bf16-matched ref"
    # loose vs. the exact f32 PyTorch-equivalent reference
    assert jnp.allclose(out, ref_f32, atol=3e-2), "mismatch vs f32 ref"
    # rows are valid probability distributions (exact divide -> ~f32 rounding)
    assert jnp.allclose(jnp.sum(out, axis=1), 1.0, atol=2e-3)

    print("KERNEL_OK")
</pallas_src>

<mosaic_0001>
module attributes {stable_mosaic.version = 11 : i64} {
  func.func @fnn_kernel(%arg0: i32, %arg1: memref<16x3072xf32, #tpu.memory_space<vmem>>, %arg2: memref<3072x64xbf16, #tpu.memory_space<vmem>>, %arg3: memref<1x64xf32, #tpu.memory_space<vmem>>, %arg4: memref<64x32xf32, #tpu.memory_space<vmem>>, %arg5: memref<1x32xf32, #tpu.memory_space<vmem>>, %arg6: memref<32x128xf32, #tpu.memory_space<vmem>>, %arg7: memref<1x128xf32, #tpu.memory_space<vmem>>, %arg8: memref<16x128xf32, #tpu.memory_space<vmem>>) attributes {dimension_semantics = [#tpu.dimension_semantics<parallel>], iteration_bounds = array<i64: 1>, scalar_prefetch = 0 : i64, scratch_operands = 0 : i64, tpu.core_type = #tpu.core_type<tc>, window_params = [{transform_indices = @transform_0, window_bounds = array<i64: 16, 3072>}, {pipeline_mode = #tpu.pipeline_mode<synchronous>, transform_indices = @transform_1, window_bounds = array<i64: 3072, 64>}, {pipeline_mode = #tpu.pipeline_mode<synchronous>, transform_indices = @transform_2, window_bounds = array<i64: 1, 64>}, {pipeline_mode = #tpu.pipeline_mode<synchronous>, transform_indices = @transform_3, window_bounds = array<i64: 64, 32>}, {pipeline_mode = #tpu.pipeline_mode<synchronous>, transform_indices = @transform_4, window_bounds = array<i64: 1, 32>}, {pipeline_mode = #tpu.pipeline_mode<synchronous>, transform_indices = @transform_5, window_bounds = array<i64: 32, 128>}, {pipeline_mode = #tpu.pipeline_mode<synchronous>, transform_indices = @transform_6, window_bounds = array<i64: 1, 128>}, {transform_indices = @transform_7, window_bounds = array<i64: 16, 128>}]} {
    %c0 = arith.constant 0 : index
    %c0_0 = arith.constant 0 : index
    %0 = vector.load %arg1[%c0, %c0_0] : memref<16x3072xf32, #tpu.memory_space<vmem>>, vector<16x3072xf32>
    %1 = arith.truncf %0 : vector<16x3072xf32> to vector<16x3072xbf16>
    %c0_1 = arith.constant 0 : index
    %c0_2 = arith.constant 0 : index
    %2 = vector.load %arg2[%c0_1, %c0_2] : memref<3072x64xbf16, #tpu.memory_space<vmem>>, vector<3072x64xbf16>
    %cst = arith.constant dense<0.000000e+00> : vector<16x64xf32>
    %3 = tpu.matmul %1, %2, %cst {dimension_numbers = #tpu.dot_dimension_numbers<[1], [0], [0], [1], [0, 0, 1, 1], [], []>} : vector<16x3072xbf16>, vector<3072x64xbf16>, vector<16x64xf32> -> vector<16x64xf32>
    %c0_3 = arith.constant 0 : index
    %c0_4 = arith.constant 0 : index
    %4 = vector.load %arg3[%c0_3, %c0_4] : memref<1x64xf32, #tpu.memory_space<vmem>>, vector<1x64xf32>
    %5 = vector.broadcast %4 : vector<1x64xf32> to vector<16x64xf32>
    %6 = arith.addf %3, %5 : vector<16x64xf32>
    %7 = math.tanh %6 : vector<16x64xf32>
    %c0_5 = arith.constant 0 : index
    %c0_6 = arith.constant 0 : index
    %8 = vector.load %arg4[%c0_5, %c0_6] : memref<64x32xf32, #tpu.memory_space<vmem>>, vector<64x32xf32>
    %cst_7 = arith.constant dense<0.000000e+00> : vector<16x32xf32>
    %9 = tpu.matmul %7, %8, %cst_7 {dimension_numbers = #tpu.dot_dimension_numbers<[1], [0], [0], [1], [0, 0, 1, 1], [], []>} : vector<16x64xf32>, vector<64x32xf32>, vector<16x32xf32> -> vector<16x32xf32>
    %c0_8 = arith.constant 0 : index
    %c0_9 = arith.constant 0 : index
    %10 = vector.load %arg5[%c0_8, %c0_9] : memref<1x32xf32, #tpu.memory_space<vmem>>, vector<1x32xf32>
    %11 = vector.broadcast %10 : vector<1x32xf32> to vector<16x32xf32>
    %12 = arith.addf %9, %11 : vector<16x32xf32>
    %cst_10 = arith.constant 0.000000e+00 : f32
    %13 = vector.broadcast %cst_10 : f32 to vector<16x32xf32>
    %14 = arith.maximumf %12, %13 : vector<16x32xf32>
    %c0_11 = arith.constant 0 : index
    %c0_12 = arith.constant 0 : index
    %15 = vector.load %arg6[%c0_11, %c0_12] : memref<32x128xf32, #tpu.memory_space<vmem>>, vector<32x128xf32>
    %cst_13 = arith.constant dense<0.000000e+00> : vector<16x128xf32>
    %16 = tpu.matmul %14, %15, %cst_13 {dimension_numbers = #tpu.dot_dimension_numbers<[1], [0], [0], [1], [0, 0, 1, 1], [], []>} : vector<16x32xf32>, vector<32x128xf32>, vector<16x128xf32> -> vector<16x128xf32>
    %c0_14 = arith.constant 0 : index
    %c0_15 = arith.constant 0 : index
    %17 = vector.load %arg7[%c0_14, %c0_15] : memref<1x128xf32, #tpu.memory_space<vmem>>, vector<1x128xf32>
    %18 = vector.broadcast %17 : vector<1x128xf32> to vector<16x128xf32>
    %19 = arith.addf %16, %18 : vector<16x128xf32>
    %cst_16 = arith.constant dense<0xFF800000> : vector<16xf32>
    %20 = vector.multi_reduction <maximumf>, %19, %cst_16 [1] : vector<16x128xf32> to vector<16xf32>
    %21 = vector.shape_cast %20 : vector<16xf32> to vector<16x1xf32>
    %22 = vector.broadcast %21 : vector<16x1xf32> to vector<16x128xf32>
    %23 = arith.subf %19, %22 : vector<16x128xf32>
    %24 = math.exp %23 : vector<16x128xf32>
    %cst_17 = arith.constant dense<0.000000e+00> : vector<16xf32>
    %25 = vector.multi_reduction <add>, %24, %cst_17 [1] : vector<16x128xf32> to vector<16xf32>
    %26 = vector.shape_cast %25 : vector<16xf32> to vector<16x1xf32>
    %27 = vector.broadcast %26 : vector<16x1xf32> to vector<16x128xf32>
    %28 = arith.divf %24, %27 : vector<16x128xf32>
    %c0_18 = arith.constant 0 : index
    %c0_19 = arith.constant 0 : index
    %29 = vector.load %arg8[%c0_18, %c0_19] : memref<16x128xf32, #tpu.memory_space<vmem>>, vector<16x128xf32>
    tpu.vector_store %arg8[%c0_18, %c0_19], %28 {strides = array<i32>} : memref<16x128xf32, #tpu.memory_space<vmem>>, vector<16x128xf32>,
    return
  }
  func.func @transform_0(%arg0: i32) -> (i32, i32) {
    %c0_i32 = arith.constant 0 : i32
    %c0_i32_0 = arith.constant 0 : i32
    return %arg0, %c0_i32 : i32, i32
  }
  func.func @transform_1(%arg0: i32) -> (i32, i32) {
    %c0_i32 = arith.constant 0 : i32
    %c0_i32_0 = arith.constant 0 : i32
    %c0_i32_1 = arith.constant 0 : i32
    return %c0_i32, %c0_i32_0 : i32, i32
  }
  func.func @transform_2(%arg0: i32) -> (i32, i32) {
    %c0_i32 = arith.constant 0 : i32
    %c0_i32_0 = arith.constant 0 : i32
    %c0_i32_1 = arith.constant 0 : i32
    return %c0_i32, %c0_i32_0 : i32, i32
  }
  func.func @transform_3(%arg0: i32) -> (i32, i32) {
    %c0_i32 = arith.constant 0 : i32
    %c0_i32_0 = arith.constant 0 : i32
    %c0_i32_1 = arith.constant 0 : i32
    return %c0_i32, %c0_i32_0 : i32, i32
  }
  func.func @transform_4(%arg0: i32) -> (i32, i32) {
    %c0_i32 = arith.constant 0 : i32
    %c0_i32_0 = arith.constant 0 : i32
    %c0_i32_1 = arith.constant 0 : i32
    return %c0_i32, %c0_i32_0 : i32, i32
  }
  func.func @transform_5(%arg0: i32) -> (i32, i32) {
    %c0_i32 = arith.constant 0 : i32
    %c0_i32_0 = arith.constant 0 : i32
    %c0_i32_1 = arith.constant 0 : i32
    return %c0_i32, %c0_i32_0 : i32, i32
  }
  func.func @transform_6(%arg0: i32) -> (i32, i32) {
    %c0_i32 = arith.constant 0 : i32
    %c0_i32_0 = arith.constant 0 : i32
    %c0_i32_1 = arith.constant 0 : i32
    return %c0_i32, %c0_i32_0 : i32, i32
  }
  func.func @transform_7(%arg0: i32) -> (i32, i32) {
    %c0_i32 = arith.constant 0 : i32
    %c0_i32_0 = arith.constant 0 : i32
    return %arg0, %c0_i32 : i32, i32
  }
}

</mosaic_0001>

<llo_original>
// kernel: tpu_custom_call.1
$region0: #{tpu_custom_call.1}
  #allocation0 [shape = 'u32[]', space=smem, size = 0x4, offset = 0x4, fixed_abs, tag = 'smem constant byte address 0x4 - core index']
  #allocation1 [shape = 'u32[144,128]{1,0:T(1,128)}', space=vmem, size = 0x12000, scoped, tag = 'internal scratch']
  %s0 = inlined_call_operand.vmem [shape: f32[16,3072], index: 0, kind: input, shape index: {}]
  %s1 = inlined_call_operand.vmem [shape: bf16[3072,64], index: 1, kind: input, shape index: {}]
  %s2 = inlined_call_operand.vmem [shape: f32[1,64], index: 2, kind: input, shape index: {}]
  %s3 = inlined_call_operand.vmem [shape: f32[64,32], index: 3, kind: input, shape index: {}]
  %s4 = inlined_call_operand.vmem [shape: f32[1,32], index: 4, kind: input, shape index: {}]
  %s5 = inlined_call_operand.vmem [shape: f32[32,128], index: 5, kind: input, shape index: {}]
  %s6 = inlined_call_operand.vmem [shape: f32[1,128], index: 6, kind: input, shape index: {}]
  %s7 = inlined_call_operand.hbm [shape: f32[16,128], index: 7, kind: output, shape index: {}]
  %s8 = sld [smem:[#allocation0]]
  $region38: #{tpu_custom_call.1} parent=0
    _
  %s10 = ssub.s32 1, %s8
  %s11 = scalar_select 0, %s10, %s8
  $region1: #{tpu_custom_call.1} parent=0
    #allocation2 [shape = 'u8[8192]{0}', space=vmem, size = 0x2000, scoped, tag = 'output window, operand 0, single buffered']
    #allocation3 [shape = 's32[1]{0}', space=sflag, size = 0x4, scoped, tag = 'scoped memory for tpu_custom_call.1']
    %12 = vsyncpa [#allocation3], 0
    // Predicated region
    $region2: #{tpu_custom_call.1} parent=1 // pred_check
      _
    $region3: #{tpu_custom_call.1} parent=1 // pred_check_branch
      %14 = sbr.rel (0) target = $region5
    $region4: #{tpu_custom_call.1} parent=1 // pred_region
      _
    $region5: #{tpu_custom_call.1} parent=1 // pred_fallthru
      _
    // Predicated region
    $region6: #{tpu_custom_call.1} parent=1 // pred_check
      _
    $region7: #{tpu_custom_call.1} parent=1 // pred_check_branch
      %16 = sbr.rel (0) target = $region9
    $region8: #{tpu_custom_call.1} parent=1 // pred_region
      _
    $region9: #{tpu_custom_call.1} parent=1 // pred_fallthru
      _
    // Predicated region
    $region10: #{tpu_custom_call.1} parent=1 // pred_check
      _
    $region11: #{tpu_custom_call.1} parent=1 // pred_check_branch
      %18 = sbr.rel (0) target = $region13
    $region12: #{tpu_custom_call.1} parent=1 // pred_region
      _
    $region13: #{tpu_custom_call.1} parent=1 // pred_fallthru
      _
    // Predicated region
    $region14: #{tpu_custom_call.1} parent=1 // pred_check
      _
    $region15: #{tpu_custom_call.1} parent=1 // pred_check_branch
      %20 = sbr.rel (0) target = $region17
    $region16: #{tpu_custom_call.1} parent=1 // pred_region
      _
    $region17: #{tpu_custom_call.1} parent=1 // pred_fallthru
      _
    // Predicated region
    $region18: #{tpu_custom_call.1} parent=1 // pred_check
      _
    $region19: #{tpu_custom_call.1} parent=1 // pred_check_branch
      %22 = sbr.rel (0) target = $region21
    $region20: #{tpu_custom_call.1} parent=1 // pred_region
      _
    $region21: #{tpu_custom_call.1} parent=1 // pred_fallthru
      _
    // Predicated region
    $region22: #{tpu_custom_call.1} parent=1 // pred_check
      _
    $region23: #{tpu_custom_call.1} parent=1 // pred_check_branch
      %24 = sbr.rel (0) target = $region25
    $region24: #{tpu_custom_call.1} parent=1 // pred_region
      _
    $region25: #{tpu_custom_call.1} parent=1 // pred_fallthru
      _
    // Predicated region
    $region26: #{tpu_custom_call.1} parent=1 // pred_check
      _
    $region27: #{tpu_custom_call.1} parent=1 // pred_check_branch
      %26 = sbr.rel (0) target = $region29
    $region28: #{tpu_custom_call.1} parent=1 // pred_region
      _
    $region29: #{tpu_custom_call.1} parent=1 // pred_fallthru
      _
    %v28 = vld [vmem:[%s0] sm:$0xff]
    %v29 = vld [vmem:[%s0 + $0x8] sm:$0xff]
    %v30 = vld [vmem:[%s0 + $0x10] sm:$0xff]
    %v31 = vld [vmem:[%s0 + $0x18] sm:$0xff]
    %v32 = vld [vmem:[%s0 + $0x20] sm:$0xff]
    %v33 = vld [vmem:[%s0 + $0x28] sm:$0xff]
    %v34 = vld [vmem:[%s0 + $0x30] sm:$0xff]
    %v35 = vld [vmem:[%s0 + $0x38] sm:$0xff]
    %v36 = vld [vmem:[%s0 + $0x40] sm:$0xff]
    %v37 = vld [vmem:[%s0 + $0x48] sm:$0xff]
    %v38 = vld [vmem:[%s0 + $0x50] sm:$0xff]
    %v39 = vld [vmem:[%s0 + $0x58] sm:$0xff]
    %v40 = vld [vmem:[%s0 + $0x60] sm:$0xff]
    %v41 = vld [vmem:[%s0 + $0x68] sm:$0xff]
    %v42 = vld [vmem:[%s0 + $0x70] sm:$0xff]
    %v43 = vld [vmem:[%s0 + $0x78] sm:$0xff]
    %v44 = vld [vmem:[%s0 + $0x80] sm:$0xff]
    %v45 = vld [vmem:[%s0 + $0x88] sm:$0xff]
    %v46 = vld [vmem:[%s0 + $0x90] sm:$0xff]
    %v47 = vld [vmem:[%s0 + $0x98] sm:$0xff]
    %v48 = vld [vmem:[%s0 + $0xa0] sm:$0xff]
    %v49 = vld [vmem:[%s0 + $0xa8] sm:$0xff]
    %v50 = vld [vmem:[%s0 + $0xb0] sm:$0xff]
    %v51 = vld [vmem:[%s0 + $0xb8] sm:$0xff]
    %v52 = vld [vmem:[%s0 + $0xc0] sm:$0xff]
    %v53 = vld [vmem:[%s0 + $0xc8] sm:$0xff]
    %v54 = vld [vmem:[%s0 + $0xd0] sm:$0xff]
    %v55 = vld [vmem:[%s0 + $0xd8] sm:$0xff]
    %v56 = vld [vmem:[%s0 + $0xe0] sm:$0xff]
    %v57 = vld [vmem:[%s0 + $0xe8] sm:$0xff]
    %v58 = vld [vmem:[%s0 + $0xf0] sm:$0xff]
    %v59 = vld [vmem:[%s0 + $0xf8] sm:$0xff]
    %v60 = vld [vmem:[%s0 + $0x100] sm:$0xff]
    %v61 = vld [vmem:[%s0 + $0x108] sm:$0xff]
    %v62 = vld [vmem:[%s0 + $0x110] sm:$0xff]
    %v63 = vld [vmem:[%s0 + $0x118] sm:$0xff]
    %v64 = vld [vmem:[%s0 + $0x120] sm:$0xff]
    %v65 = vld [vmem:[%s0 + $0x128] sm:$0xff]
    %v66 = vld [vmem:[%s0 + $0x130] sm:$0xff]
    %v67 = vld [vmem:[%s0 + $0x138] sm:$0xff]
    %v68 = vld [vmem:[%s0 + $0x140] sm:$0xff]
    %v69 = vld [vmem:[%s0 + $0x148] sm:$0xff]
    %v70 = vld [vmem:[%s0 + $0x150] sm:$0xff]
    %v71 = vld [vmem:[%s0 + $0x158] sm:$0xff]
    %v72 = vld [vmem:[%s0 + $0x160] sm:$0xff]
    %v73 = vld [vmem:[%s0 + $0x168] sm:$0xff]
    %v74 = vld [vmem:[%s0 + $0x170] sm:$0xff]
    %v75 = vld [vmem:[%s0 + $0x178] sm:$0xff]
    %v76 = vpack.c.bf16 %v52, %v28
    %v77 = vpack.c.bf16 %v53, %v29
    %v78 = vpack.c.bf16 %v54, %v30
    %v79 = vpack.c.bf16 %v55, %v31
    %v80 = vpack.c.bf16 %v56, %v32
    %v81 = vpack.c.bf16 %v57, %v33
    %v82 = vpack.c.bf16 %v58, %v34
    %v83 = vpack.c.bf16 %v59, %v35
    %v84 = vpack.c.bf16 %v60, %v36
    %v85 = vpack.c.bf16 %v61, %v37
    %v86 = vpack.c.bf16 %v62, %v38
    %v87 = vpack.c.bf16 %v63, %v39
    %v88 = vpack.c.bf16 %v64, %v40
    %v89 = vpack.c.bf16 %v65, %v41
    %v90 = vpack.c.bf16 %v66, %v42
    %v91 = vpack.c.bf16 %v67, %v43
    %v92 = vpack.c.bf16 %v68, %v44
    %v93 = vpack.c.bf16 %v69, %v45
    %v94 = vpack.c.bf16 %v70, %v46
    %v95 = vpack.c.bf16 %v71, %v47
    %v96 = vpack.c.bf16 %v72, %v48
    %v97 = vpack.c.bf16 %v73, %v49
    %v98 = vpack.c.bf16 %v74, %v50
    %v99 = vpack.c.bf16 %v75, %v51
    %v100 = vld [vmem:[%s1] sm:$0xf]
    %v101 = vld [vmem:[%s1 + $0x4] sm:$0xf]
    %v102 = vld [vmem:[%s1 + $0x8] sm:$0xf]
    %v103 = vld [vmem:[%s1 + $0xc] sm:$0xf]
    %v104 = vld [vmem:[%s1 + $0x10] sm:$0xf]
    %v105 = vld [vmem:[%s1 + $0x14] sm:$0xf]
    %v106 = vld [vmem:[%s1 + $0x18] sm:$0xf]
    %v107 = vld [vmem:[%s1 + $0x1c] sm:$0xf]
    %v108 = vld [vmem:[%s1 + $0x20] sm:$0xf]
    %v109 = vld [vmem:[%s1 + $0x24] sm:$0xf]
    %v110 = vld [vmem:[%s1 + $0x28] sm:$0xf]
    %v111 = vld [vmem:[%s1 + $0x2c] sm:$0xf]
    %v112 = vld [vmem:[%s1 + $0x30] sm:$0xf]
    %v113 = vld [vmem:[%s1 + $0x34] sm:$0xf]
    %v114 = vld [vmem:[%s1 + $0x38] sm:$0xf]
    %v115 = vld [vmem:[%s1 + $0x3c] sm:$0xf]
    %v116 = vld [vmem:[%s1 + $0x40] sm:$0xf]
    %v117 = vld [vmem:[%s1 + $0x44] sm:$0xf]
    %v118 = vld [vmem:[%s1 + $0x48] sm:$0xf]
    %v119 = vld [vmem:[%s1 + $0x4c] sm:$0xf]
    %v120 = vld [vmem:[%s1 + $0x50] sm:$0xf]
    %v121 = vld [vmem:[%s1 + $0x54] sm:$0xf]
    %v122 = vld [vmem:[%s1 + $0x58] sm:$0xf]
    %v123 = vld [vmem:[%s1 + $0x5c] sm:$0xf]
    %v124 = vld [vmem:[%s1 + $0x60] sm:$0xf]
    %v125 = vld [vmem:[%s1 + $0x64] sm:$0xf]
    %v126 = vld [vmem:[%s1 + $0x68] sm:$0xf]
    %v127 = vld [vmem:[%s1 + $0x6c] sm:$0xf]
    %v128 = vld [vmem:[%s1 + $0x70] sm:$0xf]
    %v129 = vld [vmem:[%s1 + $0x74] sm:$0xf]
    %v130 = vld [vmem:[%s1 + $0x78] sm:$0xf]
    %v131 = vld [vmem:[%s1 + $0x7c] sm:$0xf]
    %v132 = vld [vmem:[%s1 + $0x80] sm:$0xf]
    %v133 = vld [vmem:[%s1 + $0x84] sm:$0xf]
    %v134 = vld [vmem:[%s1 + $0x88] sm:$0xf]
    %v135 = vld [vmem:[%s1 + $0x8c] sm:$0xf]
    %v136 = vld [vmem:[%s1 + $0x90] sm:$0xf]
    %v137 = vld [vmem:[%s1 + $0x94] sm:$0xf]
    %v138 = vld [vmem:[%s1 + $0x98] sm:$0xf]
    %v139 = vld [vmem:[%s1 + $0x9c] sm:$0xf]
    %v140 = vld [vmem:[%s1 + $0xa0] sm:$0xf]
    %v141 = vld [vmem:[%s1 + $0xa4] sm:$0xf]
    %v142 = vld [vmem:[%s1 + $0xa8] sm:$0xf]
    %v143 = vld [vmem:[%s1 + $0xac] sm:$0xf]
    %v144 = vld [vmem:[%s1 + $0xb0] sm:$0xf]
    %v145 = vld [vmem:[%s1 + $0xb4] sm:$0xf]
    %v146 = vld [vmem:[%s1 + $0xb8] sm:$0xf]
    %v147 = vld [vmem:[%s1 + $0xbc] sm:$0xf]
    %v148 = vld [vmem:[%s1 + $0xc0] sm:$0xf]
    %v149 = vld [vmem:[%s1 + $0xc4] sm:$0xf]
    %v150 = vld [vmem:[%s1 + $0xc8] sm:$0xf]
    %v151 = vld [vmem:[%s1 + $0xcc] sm:$0xf]
    %v152 = vld [vmem:[%s1 + $0xd0] sm:$0xf]
    %v153 = vld [vmem:[%s1 + $0xd4] sm:$0xf]
    %v154 = vld [vmem:[%s1 + $0xd8] sm:$0xf]
    %v155 = vld [vmem:[%s1 + $0xdc] sm:$0xf]
    %v156 = vld [vmem:[%s1 + $0xe0] sm:$0xf]
    %v157 = vld [vmem:[%s1 + $0xe4] sm:$0xf]
    %v158 = vld [vmem:[%s1 + $0xe8] sm:$0xf]
    %v159 = vld [vmem:[%s1 + $0xec] sm:$0xf]
    %v160 = vld [vmem:[%s1 + $0xf0] sm:$0xf]
    %v161 = vld [vmem:[%s1 + $0xf4] sm:$0xf]
    %v162 = vld [vmem:[%s1 + $0xf8] sm:$0xf]
    %v163 = vld [vmem:[%s1 + $0xfc] sm:$0xf]
    %v164 = vld [vmem:[%s1 + $0x100] sm:$0xf]
    %v165 = vld [vmem:[%s1 + $0x104] sm:$0xf]
    %v166 = vld [vmem:[%s1 + $0x108] sm:$0xf]
    %v167 = vld [vmem:[%s1 + $0x10c] sm:$0xf]
    %v168 = vld [vmem:[%s1 + $0x110] sm:$0xf]
    %v169 = vld [vmem:[%s1 + $0x114] sm:$0xf]
    %v170 = vld [vmem:[%s1 + $0x118] sm:$0xf]
    %v171 = vld [vmem:[%s1 + $0x11c] sm:$0xf]
    %v172 = vld [vmem:[%s1 + $0x120] sm:$0xf]
    %v173 = vld [vmem:[%s1 + $0x124] sm:$0xf]
    %v174 = vld [vmem:[%s1 + $0x128] sm:$0xf]
    %v175 = vld [vmem:[%s1 + $0x12c] sm:$0xf]
    %v176 = vld [vmem:[%s1 + $0x130] sm:$0xf]
    %v177 = vld [vmem:[%s1 + $0x134] sm:$0xf]
    %v178 = vld [vmem:[%s1 + $0x138] sm:$0xf]
    %v179 = vld [vmem:[%s1 + $0x13c] sm:$0xf]
    %v180 = vld [vmem:[%s1 + $0x140] sm:$0xf]
    %v181 = vld [vmem:[%s1 + $0x144] sm:$0xf]
    %v182 = vld [vmem:[%s1 + $0x148] sm:$0xf]
    %v183 = vld [vmem:[%s1 + $0x14c] sm:$0xf]
    %v184 = vld [vmem:[%s1 + $0x150] sm:$0xf]
    %v185 = vld [vmem:[%s1 + $0x154] sm:$0xf]
    %v186 = vld [vmem:[%s1 + $0x158] sm:$0xf]
    %v187 = vld [vmem:[%s1 + $0x15c] sm:$0xf]
    %v188 = vld [vmem:[%s1 + $0x160] sm:$0xf]
    %v189 = vld [vmem:[%s1 + $0x164] sm:$0xf]
    %v190 = vld [vmem:[%s1 + $0x168] sm:$0xf]
    %v191 = vld [vmem:[%s1 + $0x16c] sm:$0xf]
    %v192 = vld [vmem:[%s1 + $0x170] sm:$0xf]
    %v193 = vld [vmem:[%s1 + $0x174] sm:$0xf]
    %v194 = vld [vmem:[%s1 + $0x178] sm:$0xf]
    %v195 = vld [vmem:[%s1 + $0x17c] sm:$0xf]
    %v196 = vld [vmem:[%s1 + $0x180] sm:$0xf]
    %v197 = vld [vmem:[%s1 + $0x184] sm:$0xf]
    %v198 = vld [vmem:[%s1 + $0x188] sm:$0xf]
    %v199 = vld [vmem:[%s1 + $0x18c] sm:$0xf]
    %v200 = vld [vmem:[%s1 + $0x190] sm:$0xf]
    %v201 = vld [vmem:[%s1 + $0x194] sm:$0xf]
    %v202 = vld [vmem:[%s1 + $0x198] sm:$0xf]
    %v203 = vld [vmem:[%s1 + $0x19c] sm:$0xf]
    %v204 = vld [vmem:[%s1 + $0x1a0] sm:$0xf]
    %v205 = vld [vmem:[%s1 + $0x1a4] sm:$0xf]
    %v206 = vld [vmem:[%s1 + $0x1a8] sm:$0xf]
    %v207 = vld [vmem:[%s1 + $0x1ac] sm:$0xf]
    %v208 = vld [vmem:[%s1 + $0x1b0] sm:$0xf]
    %v209 = vld [vmem:[%s1 + $0x1b4] sm:$0xf]
    %v210 = vld [vmem:[%s1 + $0x1b8] sm:$0xf]
    %v211 = vld [vmem:[%s1 + $0x1bc] sm:$0xf]
    %v212 = vld [vmem:[%s1 + $0x1c0] sm:$0xf]
    %v213 = vld [vmem:[%s1 + $0x1c4] sm:$0xf]
    %v214 = vld [vmem:[%s1 + $0x1c8] sm:$0xf]
    %v215 = vld [vmem:[%s1 + $0x1cc] sm:$0xf]
    %v216 = vld [vmem:[%s1 + $0x1d0] sm:$0xf]
    %v217 = vld [vmem:[%s1 + $0x1d4] sm:$0xf]
    %v218 = vld [vmem:[%s1 + $0x1d8] sm:$0xf]
    %v219 = vld [vmem:[%s1 + $0x1dc] sm:$0xf]
    %v220 = vld [vmem:[%s1 + $0x1e0] sm:$0xf]
    %v221 = vld [vmem:[%s1 + $0x1e4] sm:$0xf]
    %v222 = vld [vmem:[%s1 + $0x1e8] sm:$0xf]
    %v223 = vld [vmem:[%s1 + $0x1ec] sm:$0xf]
    %v224 = vld [vmem:[%s1 + $0x1f0] sm:$0xf]
    %v225 = vld [vmem:[%s1 + $0x1f4] sm:$0xf]
    %v226 = vld [vmem:[%s1 + $0x1f8] sm:$0xf]
    %v227 = vld [vmem:[%s1 + $0x1fc] sm:$0xf]
    %v228 = vld [vmem:[%s1 + $0x200] sm:$0xf]
    %v229 = vld [vmem:[%s1 + $0x204] sm:$0xf]
    %v230 = vld [vmem:[%s1 + $0x208] sm:$0xf]
    %v231 = vld [vmem:[%s1 + $0x20c] sm:$0xf]
    %v232 = vld [vmem:[%s1 + $0x210] sm:$0xf]
    %v233 = vld [vmem:[%s1 + $0x214] sm:$0xf]
    %v234 = vld [vmem:[%s1 + $0x218] sm:$0xf]
    %v235 = vld [vmem:[%s1 + $0x21c] sm:$0xf]
    %v236 = vld [vmem:[%s1 + $0x220] sm:$0xf]
    %v237 = vld [vmem:[%s1 + $0x224] sm:$0xf]
    %v238 = vld [vmem:[%s1 + $0x228] sm:$0xf]
    %v239 = vld [vmem:[%s1 + $0x22c] sm:$0xf]
    %v240 = vld [vmem:[%s1 + $0x230] sm:$0xf]
    %v241 = vld [vmem:[%s1 + $0x234] sm:$0xf]
    %v242 = vld [vmem:[%s1 + $0x238] sm:$0xf]
    %v243 = vld [vmem:[%s1 + $0x23c] sm:$0xf]
    %v244 = vld [vmem:[%s1 + $0x240] sm:$0xf]
    %v245 = vld [vmem:[%s1 + $0x244] sm:$0xf]
    %v246 = vld [vmem:[%s1 + $0x248] sm:$0xf]
    %v247 = vld [vmem:[%s1 + $0x24c] sm:$0xf]
    %v248 = vld [vmem:[%s1 + $0x250] sm:$0xf]
    %v249 = vld [vmem:[%s1 + $0x254] sm:$0xf]
    %v250 = vld [vmem:[%s1 + $0x258] sm:$0xf]
    %v251 = vld [vmem:[%s1 + $0x25c] sm:$0xf]
    %v252 = vld [vmem:[%s1 + $0x260] sm:$0xf]
    %v253 = vld [vmem:[%s1 + $0x264] sm:$0xf]
    %v254 = vld [vmem:[%s1 + $0x268] sm:$0xf]
    %v255 = vld [vmem:[%s1 + $0x26c] sm:$0xf]
    %v256 = vld [vmem:[%s1 + $0x270] sm:$0xf]
    %v257 = vld [vmem:[%s1 + $0x274] sm:$0xf]
    %v258 = vld [vmem:[%s1 + $0x278] sm:$0xf]
    %v259 = vld [vmem:[%s1 + $0x27c] sm:$0xf]
    %v260 = vld [vmem:[%s1 + $0x280] sm:$0xf]
    %v261 = vld [vmem:[%s1 + $0x284] sm:$0xf]
    %v262 = vld [vmem:[%s1 + $0x288] sm:$0xf]
    %v263 = vld [vmem:[%s1 + $0x28c] sm:$0xf]
    %v264 = vld [vmem:[%s1 + $0x290] sm:$0xf]
    %v265 = vld [vmem:[%s1 + $0x294] sm:$0xf]
    %v266 = vld [vmem:[%s1 + $0x298] sm:$0xf]
    %v267 = vld [vmem:[%s1 + $0x29c] sm:$0xf]
    %v268 = vld [vmem:[%s1 + $0x2a0] sm:$0xf]
    %v269 = vld [vmem:[%s1 + $0x2a4] sm:$0xf]
    %v270 = vld [vmem:[%s1 + $0x2a8] sm:$0xf]
    %v271 = vld [vmem:[%s1 + $0x2ac] sm:$0xf]
    %v272 = vld [vmem:[%s1 + $0x2b0] sm:$0xf]
    %v273 = vld [vmem:[%s1 + $0x2b4] sm:$0xf]
    %v274 = vld [vmem:[%s1 + $0x2b8] sm:$0xf]
    %v275 = vld [vmem:[%s1 + $0x2bc] sm:$0xf]
    %v276 = vld [vmem:[%s1 + $0x2c0] sm:$0xf]
    %v277 = vld [vmem:[%s1 + $0x2c4] sm:$0xf]
    %v278 = vld [vmem:[%s1 + $0x2c8] sm:$0xf]
    %v279 = vld [vmem:[%s1 + $0x2cc] sm:$0xf]
    %v280 = vld [vmem:[%s1 + $0x2d0] sm:$0xf]
    %v281 = vld [vmem:[%s1 + $0x2d4] sm:$0xf]
    %v282 = vld [vmem:[%s1 + $0x2d8] sm:$0xf]
    %v283 = vld [vmem:[%s1 + $0x2dc] sm:$0xf]
    %v284 = vld [vmem:[%s1 + $0x2e0] sm:$0xf]
    %v285 = vld [vmem:[%s1 + $0x2e4] sm:$0xf]
    %v286 = vld [vmem:[%s1 + $0x2e8] sm:$0xf]
    %v287 = vld [vmem:[%s1 + $0x2ec] sm:$0xf]
    %v288 = vld [vmem:[%s1 + $0x2f0] sm:$0xf]
    %v289 = vld [vmem:[%s1 + $0x2f4] sm:$0xf]
    %v290 = vld [vmem:[%s1 + $0x2f8] sm:$0xf]
    %v291 = vld [vmem:[%s1 + $0x2fc] sm:$0xf]
    %v292 = vld [vmem:[%s1 + $0x300] sm:$0xf]
    %v293 = vld [vmem:[%s1 + $0x304] sm:$0xf]
    %v294 = vld [vmem:[%s1 + $0x308] sm:$0xf]
    %v295 = vld [vmem:[%s1 + $0x30c] sm:$0xf]
    %v296 = vld [vmem:[%s1 + $0x310] sm:$0xf]
    %v297 = vld [vmem:[%s1 + $0x314] sm:$0xf]
    %v298 = vld [vmem:[%s1 + $0x318] sm:$0xf]
    %v299 = vld [vmem:[%s1 + $0x31c] sm:$0xf]
    %v300 = vld [vmem:[%s1 + $0x320] sm:$0xf]
    %v301 = vld [vmem:[%s1 + $0x324] sm:$0xf]
    %v302 = vld [vmem:[%s1 + $0x328] sm:$0xf]
    %v303 = vld [vmem:[%s1 + $0x32c] sm:$0xf]
    %v304 = vld [vmem:[%s1 + $0x330] sm:$0xf]
    %v305 = vld [vmem:[%s1 + $0x334] sm:$0xf]
    %v306 = vld [vmem:[%s1 + $0x338] sm:$0xf]
    %v307 = vld [vmem:[%s1 + $0x33c] sm:$0xf]
    %v308 = vld [vmem:[%s1 + $0x340] sm:$0xf]
    %v309 = vld [vmem:[%s1 + $0x344] sm:$0xf]
    %v310 = vld [vmem:[%s1 + $0x348] sm:$0xf]
    %v311 = vld [vmem:[%s1 + $0x34c] sm:$0xf]
    %v312 = vld [vmem:[%s1 + $0x350] sm:$0xf]
    %v313 = vld [vmem:[%s1 + $0x354] sm:$0xf]
    %v314 = vld [vmem:[%s1 + $0x358] sm:$0xf]
    %v315 = vld [vmem:[%s1 + $0x35c] sm:$0xf]
    %v316 = vld [vmem:[%s1 + $0x360] sm:$0xf]
    %v317 = vld [vmem:[%s1 + $0x364] sm:$0xf]
    %v318 = vld [vmem:[%s1 + $0x368] sm:$0xf]
    %v319 = vld [vmem:[%s1 + $0x36c] sm:$0xf]
    %v320 = vld [vmem:[%s1 + $0x370] sm:$0xf]
    %v321 = vld [vmem:[%s1 + $0x374] sm:$0xf]
    %v322 = vld [vmem:[%s1 + $0x378] sm:$0xf]
    %v323 = vld [vmem:[%s1 + $0x37c] sm:$0xf]
    %v324 = vld [vmem:[%s1 + $0x380] sm:$0xf]
    %v325 = vld [vmem:[%s1 + $0x384] sm:$0xf]
    %v326 = vld [vmem:[%s1 + $0x388] sm:$0xf]
    %v327 = vld [vmem:[%s1 + $0x38c] sm:$0xf]
    %v328 = vld [vmem:[%s1 + $0x390] sm:$0xf]
    %v329 = vld [vmem:[%s1 + $0x394] sm:$0xf]
    %v330 = vld [vmem:[%s1 + $0x398] sm:$0xf]
    %v331 = vld [vmem:[%s1 + $0x39c] sm:$0xf]
    %v332 = vld [vmem:[%s1 + $0x3a0] sm:$0xf]
    %v333 = vld [vmem:[%s1 + $0x3a4] sm:$0xf]
    %v334 = vld [vmem:[%s1 + $0x3a8] sm:$0xf]
    %v335 = vld [vmem:[%s1 + $0x3ac] sm:$0xf]
    %v336 = vld [vmem:[%s1 + $0x3b0] sm:$0xf]
    %v337 = vld [vmem:[%s1 + $0x3b4] sm:$0xf]
    %v338 = vld [vmem:[%s1 + $0x3b8] sm:$0xf]
    %v339 = vld [vmem:[%s1 + $0x3bc] sm:$0xf]
    %v340 = vld [vmem:[%s1 + $0x3c0] sm:$0xf]
    %v341 = vld [vmem:[%s1 + $0x3c4] sm:$0xf]
    %v342 = vld [vmem:[%s1 + $0x3c8] sm:$0xf]
    %v343 = vld [vmem:[%s1 + $0x3cc] sm:$0xf]
    %v344 = vld [vmem:[%s1 + $0x3d0] sm:$0xf]
    %v345 = vld [vmem:[%s1 + $0x3d4] sm:$0xf]
    %v346 = vld [vmem:[%s1 + $0x3d8] sm:$0xf]
    %v347 = vld [vmem:[%s1 + $0x3dc] sm:$0xf]
    %v348 = vld [vmem:[%s1 + $0x3e0] sm:$0xf]
    %v349 = vld [vmem:[%s1 + $0x3e4] sm:$0xf]
    %v350 = vld [vmem:[%s1 + $0x3e8] sm:$0xf]
    %v351 = vld [vmem:[%s1 + $0x3ec] sm:$0xf]
    %v352 = vld [vmem:[%s1 + $0x3f0] sm:$0xf]
    %v353 = vld [vmem:[%s1 + $0x3f4] sm:$0xf]
    %v354 = vld [vmem:[%s1 + $0x3f8] sm:$0xf]
    %v355 = vld [vmem:[%s1 + $0x3fc] sm:$0xf]
    %v356 = vld [vmem:[%s1 + $0x400] sm:$0xf]
    %v357 = vld [vmem:[%s1 + $0x404] sm:$0xf]
    %v358 = vld [vmem:[%s1 + $0x408] sm:$0xf]
    %v359 = vld [vmem:[%s1 + $0x40c] sm:$0xf]
    %v360 = vld [vmem:[%s1 + $0x410] sm:$0xf]
    %v361 = vld [vmem:[%s1 + $0x414] sm:$0xf]
    %v362 = vld [vmem:[%s1 + $0x418] sm:$0xf]
    %v363 = vld [vmem:[%s1 + $0x41c] sm:$0xf]
    %v364 = vld [vmem:[%s1 + $0x420] sm:$0xf]
    %v365 = vld [vmem:[%s1 + $0x424] sm:$0xf]
    %v366 = vld [vmem:[%s1 + $0x428] sm:$0xf]
    %v367 = vld [vmem:[%s1 + $0x42c] sm:$0xf]
    %v368 = vld [vmem:[%s1 + $0x430] sm:$0xf]
    %v369 = vld [vmem:[%s1 + $0x434] sm:$0xf]
    %v370 = vld [vmem:[%s1 + $0x438] sm:$0xf]
    %v371 = vld [vmem:[%s1 + $0x43c] sm:$0xf]
    %v372 = vld [vmem:[%s1 + $0x440] sm:$0xf]
    %v373 = vld [vmem:[%s1 + $0x444] sm:$0xf]
    %v374 = vld [vmem:[%s1 + $0x448] sm:$0xf]
    %v375 = vld [vmem:[%s1 + $0x44c] sm:$0xf]
    %v376 = vld [vmem:[%s1 + $0x450] sm:$0xf]
    %v377 = vld [vmem:[%s1 + $0x454] sm:$0xf]
    %v378 = vld [vmem:[%s1 + $0x458] sm:$0xf]
    %v379 = vld [vmem:[%s1 + $0x45c] sm:$0xf]
    %v380 = vld [vmem:[%s1 + $0x460] sm:$0xf]
    %v381 = vld [vmem:[%s1 + $0x464] sm:$0xf]
    %v382 = vld [vmem:[%s1 + $0x468] sm:$0xf]
    %v383 = vld [vmem:[%s1 + $0x46c] sm:$0xf]
    %v384 = vld [vmem:[%s1 + $0x470] sm:$0xf]
    %v385 = vld [vmem:[%s1 + $0x474] sm:$0xf]
    %v386 = vld [vmem:[%s1 + $0x478] sm:$0xf]
    %v387 = vld [vmem:[%s1 + $0x47c] sm:$0xf]
    %v388 = vld [vmem:[%s1 + $0x480] sm:$0xf]
    %v389 = vld [vmem:[%s1 + $0x484] sm:$0xf]
    %v390 = vld [vmem:[%s1 + $0x488] sm:$0xf]
    %v391 = vld [vmem:[%s1 + $0x48c] sm:$0xf]
    %v392 = vld [vmem:[%s1 + $0x490] sm:$0xf]
    %v393 = vld [vmem:[%s1 + $0x494] sm:$0xf]
    %v394 = vld [vmem:[%s1 + $0x498] sm:$0xf]
    %v395 = vld [vmem:[%s1 + $0x49c] sm:$0xf]
    %v396 = vld [vmem:[%s1 + $0x4a0] sm:$0xf]
    %v397 = vld [vmem:[%s1 + $0x4a4] sm:$0xf]
    %v398 = vld [vmem:[%s1 + $0x4a8] sm:$0xf]
    %v399 = vld [vmem:[%s1 + $0x4ac] sm:$0xf]
    %v400 = vld [vmem:[%s1 + $0x4b0] sm:$0xf]
    %v401 = vld [vmem:[%s1 + $0x4b4] sm:$0xf]
    %v402 = vld [vmem:[%s1 + $0x4b8] sm:$0xf]
    %v403 = vld [vmem:[%s1 + $0x4bc] sm:$0xf]
    %v404 = vld [vmem:[%s1 + $0x4c0] sm:$0xf]
    %v405 = vld [vmem:[%s1 + $0x4c4] sm:$0xf]
    %v406 = vld [vmem:[%s1 + $0x4c8] sm:$0xf]
    %v407 = vld [vmem:[%s1 + $0x4cc] sm:$0xf]
    %v408 = vld [vmem:[%s1 + $0x4d0] sm:$0xf]
    %v409 = vld [vmem:[%s1 + $0x4d4] sm:$0xf]
    %v410 = vld [vmem:[%s1 + $0x4d8] sm:$0xf]
    %v411 = vld [vmem:[%s1 + $0x4dc] sm:$0xf]
    %v412 = vld [vmem:[%s1 + $0x4e0] sm:$0xf]
    %v413 = vld [vmem:[%s1 + $0x4e4] sm:$0xf]
    %v414 = vld [vmem:[%s1 + $0x4e8] sm:$0xf]
    %v415 = vld [vmem:[%s1 + $0x4ec] sm:$0xf]
    %v416 = vld [vmem:[%s1 + $0x4f0] sm:$0xf]
    %v417 = vld [vmem:[%s1 + $0x4f4] sm:$0xf]
    %v418 = vld [vmem:[%s1 + $0x4f8] sm:$0xf]
    %v419 = vld [vmem:[%s1 + $0x4fc] sm:$0xf]
    %v420 = vld [vmem:[%s1 + $0x500] sm:$0xf]
    %v421 = vld [vmem:[%s1 + $0x504] sm:$0xf]
    %v422 = vld [vmem:[%s1 + $0x508] sm:$0xf]
    %v423 = vld [vmem:[%s1 + $0x50c] sm:$0xf]
    %v424 = vld [vmem:[%s1 + $0x510] sm:$0xf]
    %v425 = vld [vmem:[%s1 + $0x514] sm:$0xf]
    %v426 = vld [vmem:[%s1 + $0x518] sm:$0xf]
    %v427 = vld [vmem:[%s1 + $0x51c] sm:$0xf]
    %v428 = vld [vmem:[%s1 + $0x520] sm:$0xf]
    %v429 = vld [vmem:[%s1 + $0x524] sm:$0xf]
    %v430 = vld [vmem:[%s1 + $0x528] sm:$0xf]
    %v431 = vld [vmem:[%s1 + $0x52c] sm:$0xf]
    %v432 = vld [vmem:[%s1 + $0x530] sm:$0xf]
    %v433 = vld [vmem:[%s1 + $0x534] sm:$0xf]
    %v434 = vld [vmem:[%s1 + $0x538] sm:$0xf]
    %v435 = vld [vmem:[%s1 + $0x53c] sm:$0xf]
    %v436 = vld [vmem:[%s1 + $0x540] sm:$0xf]
    %v437 = vld [vmem:[%s1 + $0x544] sm:$0xf]
    %v438 = vld [vmem:[%s1 + $0x548] sm:$0xf]
    %v439 = vld [vmem:[%s1 + $0x54c] sm:$0xf]
    %v440 = vld [vmem:[%s1 + $0x550] sm:$0xf]
    %v441 = vld [vmem:[%s1 + $0x554] sm:$0xf]
    %v442 = vld [vmem:[%s1 + $0x558] sm:$0xf]
    %v443 = vld [vmem:[%s1 + $0x55c] sm:$0xf]
    %v444 = vld [vmem:[%s1 + $0x560] sm:$0xf]
    %v445 = vld [vmem:[%s1 + $0x564] sm:$0xf]
    %v446 = vld [vmem:[%s1 + $0x568] sm:$0xf]
    %v447 = vld [vmem:[%s1 + $0x56c] sm:$0xf]
    %v448 = vld [vmem:[%s1 + $0x570] sm:$0xf]
    %v449 = vld [vmem:[%s1 + $0x574] sm:$0xf]
    %v450 = vld [vmem:[%s1 + $0x578] sm:$0xf]
    %v451 = vld [vmem:[%s1 + $0x57c] sm:$0xf]
    %v452 = vld [vmem:[%s1 + $0x580] sm:$0xf]
    %v453 = vld [vmem:[%s1 + $0x584] sm:$0xf]
    %v454 = vld [vmem:[%s1 + $0x588] sm:$0xf]
    %v455 = vld [vmem:[%s1 + $0x58c] sm:$0xf]
    %v456 = vld [vmem:[%s1 + $0x590] sm:$0xf]
    %v457 = vld [vmem:[%s1 + $0x594] sm:$0xf]
    %v458 = vld [vmem:[%s1 + $0x598] sm:$0xf]
    %v459 = vld [vmem:[%s1 + $0x59c] sm:$0xf]
    %v460 = vld [vmem:[%s1 + $0x5a0] sm:$0xf]
    %v461 = vld [vmem:[%s1 + $0x5a4] sm:$0xf]
    %v462 = vld [vmem:[%s1 + $0x5a8] sm:$0xf]
    %v463 = vld [vmem:[%s1 + $0x5ac] sm:$0xf]
    %v464 = vld [vmem:[%s1 + $0x5b0] sm:$0xf]
    %v465 = vld [vmem:[%s1 + $0x5b4] sm:$0xf]
    %v466 = vld [vmem:[%s1 + $0x5b8] sm:$0xf]
    %v467 = vld [vmem:[%s1 + $0x5bc] sm:$0xf]
    %v468 = vld [vmem:[%s1 + $0x5c0] sm:$0xf]
    %v469 = vld [vmem:[%s1 + $0x5c4] sm:$0xf]
    %v470 = vld [vmem:[%s1 + $0x5c8] sm:$0xf]
    %v471 = vld [vmem:[%s1 + $0x5cc] sm:$0xf]
    %v472 = vld [vmem:[%s1 + $0x5d0] sm:$0xf]
    %v473 = vld [vmem:[%s1 + $0x5d4] sm:$0xf]
    %v474 = vld [vmem:[%s1 + $0x5d8] sm:$0xf]
    %v475 = vld [vmem:[%s1 + $0x5dc] sm:$0xf]
    %v476 = vld [vmem:[%s1 + $0x5e0] sm:$0xf]
    %v477 = vld [vmem:[%s1 + $0x5e4] sm:$0xf]
    %v478 = vld [vmem:[%s1 + $0x5e8] sm:$0xf]
    %v479 = vld [vmem:[%s1 + $0x5ec] sm:$0xf]
    %v480 = vld [vmem:[%s1 + $0x5f0] sm:$0xf]
    %v481 = vld [vmem:[%s1 + $0x5f4] sm:$0xf]
    %v482 = vld [vmem:[%s1 + $0x5f8] sm:$0xf]
    %v483 = vld [vmem:[%s1 + $0x5fc] sm:$0xf]
    %v484 = vld [vmem:[%s2] sm:$0x1]
    %v486 = vlaneseq
    %v487 = vshrl.u32 %v486, 7
    %v488 = vsub.s32 0, %v487
    %v489 = vrot.slane %v484, %v488
    %v875 = vunpack.c.l.b16 %v100
    %v876 = vunpack.c.l.b16 %v101
    %v877 = vunpack.c.l.b16 %v102
    %v878 = vunpack.c.l.b16 %v103
    %v879 = vunpack.c.l.b16 %v104
    %v880 = vunpack.c.l.b16 %v105
    %v881 = vunpack.c.l.b16 %v106
    %v882 = vunpack.c.l.b16 %v107
    %v883 = vunpack.c.l.b16 %v108
    %v884 = vunpack.c.l.b16 %v109
    %v885 = vunpack.c.l.b16 %v110
    %v886 = vunpack.c.l.b16 %v111
    %v887 = vunpack.c.l.b16 %v112
    %v888 = vunpack.c.l.b16 %v113
    %v889 = vunpack.c.l.b16 %v114
    %v890 = vunpack.c.l.b16 %v115
    %v891 = vunpack.c.l.b16 %v116
    %v892 = vunpack.c.l.b16 %v117
    %v893 = vunpack.c.l.b16 %v118
    %v894 = vunpack.c.l.b16 %v119
    %v895 = vunpack.c.l.b16 %v120
    %v896 = vunpack.c.l.b16 %v121
    %v897 = vunpack.c.l.b16 %v122
    %v898 = vunpack.c.l.b16 %v123
    %v899 = vunpack.c.l.b16 %v124
    %v900 = vunpack.c.l.b16 %v125
    %v901 = vunpack.c.l.b16 %v126
    %v902 = vunpack.c.l.b16 %v127
    %v903 = vunpack.c.l.b16 %v128
    %v904 = vunpack.c.l.b16 %v129
    %v905 = vunpack.c.l.b16 %v130
    %v906 = vunpack.c.l.b16 %v131
    %v907 = vunpack.c.l.b16 %v132
    %v908 = vunpack.c.l.b16 %v133
    %v909 = vunpack.c.l.b16 %v134
    %v910 = vunpack.c.l.b16 %v135
    %v911 = vunpack.c.l.b16 %v136
    %v912 = vunpack.c.l.b16 %v137
    %v913 = vunpack.c.l.b16 %v138
    %v914 = vunpack.c.l.b16 %v139
    %v915 = vunpack.c.l.b16 %v140
    %v916 = vunpack.c.l.b16 %v141
    %v917 = vunpack.c.l.b16 %v142
    %v918 = vunpack.c.l.b16 %v143
    %v919 = vunpack.c.l.b16 %v144
    %v920 = vunpack.c.l.b16 %v145
    %v921 = vunpack.c.l.b16 %v146
    %v922 = vunpack.c.l.b16 %v147
    %v923 = vunpack.c.l.b16 %v148
    %v924 = vunpack.c.l.b16 %v149
    %v925 = vunpack.c.l.b16 %v150
    %v926 = vunpack.c.l.b16 %v151
    %v927 = vunpack.c.l.b16 %v152
    %v928 = vunpack.c.l.b16 %v153
    %v929 = vunpack.c.l.b16 %v154
    %v930 = vunpack.c.l.b16 %v155
    %v931 = vunpack.c.l.b16 %v156
    %v932 = vunpack.c.l.b16 %v157
    %v933 = vunpack.c.l.b16 %v158
    %v934 = vunpack.c.l.b16 %v159
    %v935 = vunpack.c.l.b16 %v160
    %v936 = vunpack.c.l.b16 %v161
    %v937 = vunpack.c.l.b16 %v162
    %v938 = vunpack.c.l.b16 %v163
    %v939 = vunpack.c.l.b16 %v164
    %v940 = vunpack.c.l.b16 %v165
    %v941 = vunpack.c.l.b16 %v166
    %v942 = vunpack.c.l.b16 %v167
    %v943 = vunpack.c.l.b16 %v168
    %v944 = vunpack.c.l.b16 %v169
    %v945 = vunpack.c.l.b16 %v170
    %v946 = vunpack.c.l.b16 %v171
    %v947 = vunpack.c.l.b16 %v172
    %v948 = vunpack.c.l.b16 %v173
    %v949 = vunpack.c.l.b16 %v174
    %v950 = vunpack.c.l.b16 %v175
    %v951 = vunpack.c.l.b16 %v176
    %v952 = vunpack.c.l.b16 %v177
    %v953 = vunpack.c.l.b16 %v178
    %v954 = vunpack.c.l.b16 %v179
    %v955 = vunpack.c.l.b16 %v180
    %v956 = vunpack.c.l.b16 %v181
    %v957 = vunpack.c.l.b16 %v182
    %v958 = vunpack.c.l.b16 %v183
    %v959 = vunpack.c.l.b16 %v184
    %v960 = vunpack.c.l.b16 %v185
    %v961 = vunpack.c.l.b16 %v186
    %v962 = vunpack.c.l.b16 %v187
    %v963 = vunpack.c.l.b16 %v188
    %v964 = vunpack.c.l.b16 %v189
    %v965 = vunpack.c.l.b16 %v190
    %v966 = vunpack.c.l.b16 %v191
    %v967 = vunpack.c.l.b16 %v192
    %v968 = vunpack.c.l.b16 %v193
    %v969 = vunpack.c.l.b16 %v194
    %v970 = vunpack.c.l.b16 %v195
    %v971 = vunpack.c.l.b16 %v196
    %v972 = vunpack.c.l.b16 %v197
    %v973 = vunpack.c.l.b16 %v198
    %v974 = vunpack.c.l.b16 %v199
    %v975 = vunpack.c.l.b16 %v200
    %v976 = vunpack.c.l.b16 %v201
    %v977 = vunpack.c.l.b16 %v202
    %v978 = vunpack.c.l.b16 %v203
    %v979 = vunpack.c.l.b16 %v204
    %v980 = vunpack.c.l.b16 %v205
    %v981 = vunpack.c.l.b16 %v206
    %v982 = vunpack.c.l.b16 %v207
    %v983 = vunpack.c.l.b16 %v208
    %v984 = vunpack.c.l.b16 %v209
    %v985 = vunpack.c.l.b16 %v210
    %v986 = vunpack.c.l.b16 %v211
    %v987 = vunpack.c.l.b16 %v212
    %v988 = vunpack.c.l.b16 %v213
    %v989 = vunpack.c.l.b16 %v214
    %v990 = vunpack.c.l.b16 %v215
    %v991 = vunpack.c.l.b16 %v216
    %v992 = vunpack.c.l.b16 %v217
    %v993 = vunpack.c.l.b16 %v218
    %v994 = vunpack.c.l.b16 %v219
    %v995 = vunpack.c.l.b16 %v220
    %v996 = vunpack.c.l.b16 %v221
    %v997 = vunpack.c.l.b16 %v222
    %v998 = vunpack.c.l.b16 %v223
    %v999 = vunpack.c.l.b16 %v224
    %v1000 = vunpack.c.l.b16 %v225
    %v1001 = vunpack.c.l.b16 %v226
    %v1002 = vunpack.c.l.b16 %v227
    %v1003 = vunpack.c.l.b16 %v228
    %v1004 = vunpack.c.l.b16 %v229
    %v1005 = vunpack.c.l.b16 %v230
    %v1006 = vunpack.c.l.b16 %v231
    %v1007 = vunpack.c.l.b16 %v232
    %v1008 = vunpack.c.l.b16 %v233
    %v1009 = vunpack.c.l.b16 %v234
    %v1010 = vunpack.c.l.b16 %v235
    %v1011 = vunpack.c.l.b16 %v236
    %v1012 = vunpack.c.l.b16 %v237
    %v1013 = vunpack.c.l.b16 %v238
    %v1014 = vunpack.c.l.b16 %v239
    %v1015 = vunpack.c.l.b16 %v240
    %v1016 = vunpack.c.l.b16 %v241
    %v1017 = vunpack.c.l.b16 %v242
    %v1018 = vunpack.c.l.b16 %v243
    %v1019 = vunpack.c.l.b16 %v244
    %v1020 = vunpack.c.l.b16 %v245
    %v1021 = vunpack.c.l.b16 %v246
    %v1022 = vunpack.c.l.b16 %v247
    %v1023 = vunpack.c.l.b16 %v248
    %v1024 = vunpack.c.l.b16 %v249
    %v1025 = vunpack.c.l.b16 %v250
    %v1026 = vunpack.c.l.b16 %v251
    %v1027 = vunpack.c.l.b16 %v252
    %v1028 = vunpack.c.l.b16 %v253
    %v1029 = vunpack.c.l.b16 %v254
    %v1030 = vunpack.c.l.b16 %v255
    %v1031 = vunpack.c.l.b16 %v256
    %v1032 = vunpack.c.l.b16 %v257
    %v1033 = vunpack.c.l.b16 %v258
    %v1034 = vunpack.c.l.b16 %v259
    %v1035 = vunpack.c.l.b16 %v260
    %v1036 = vunpack.c.l.b16 %v261
    %v1037 = vunpack.c.l.b16 %v262
    %v1038 = vunpack.c.l.b16 %v263
    %v1039 = vunpack.c.l.b16 %v264
    %v1040 = vunpack.c.l.b16 %v265
    %v1041 = vunpack.c.l.b16 %v266
    %v1042 = vunpack.c.l.b16 %v267
    %v1043 = vunpack.c.l.b16 %v268
    %v1044 = vunpack.c.l.b16 %v269
    %v1045 = vunpack.c.l.b16 %v270
    %v1046 = vunpack.c.l.b16 %v271
    %v1047 = vunpack.c.l.b16 %v272
    %v1048 = vunpack.c.l.b16 %v273
    %v1049 = vunpack.c.l.b16 %v274
    %v1050 = vunpack.c.l.b16 %v275
    %v1051 = vunpack.c.l.b16 %v276
    %v1052 = vunpack.c.l.b16 %v277
    %v1053 = vunpack.c.l.b16 %v278
    %v1054 = vunpack.c.l.b16 %v279
    %v1055 = vunpack.c.l.b16 %v280
    %v1056 = vunpack.c.l.b16 %v281
    %v1057 = vunpack.c.l.b16 %v282
    %v1058 = vunpack.c.l.b16 %v283
    %v1059 = vunpack.c.l.b16 %v284
    %v1060 = vunpack.c.l.b16 %v285
    %v1061 = vunpack.c.l.b16 %v286
    %v1062 = vunpack.c.l.b16 %v287
    %v1063 = vunpack.c.l.b16 %v288
    %v1064 = vunpack.c.l.b16 %v289
    %v1065 = vunpack.c.l.b16 %v290
    %v1066 = vunpack.c.l.b16 %v291
    %v1067 = vunpack.c.l.b16 %v292
    %v1068 = vunpack.c.l.b16 %v293
    %v1069 = vunpack.c.l.b16 %v294
    %v1070 = vunpack.c.l.b16 %v295
    %v1071 = vunpack.c.l.b16 %v296
    %v1072 = vunpack.c.l.b16 %v297
    %v1073 = vunpack.c.l.b16 %v298
    %v1074 = vunpack.c.l.b16 %v299
    %v1075 = vunpack.c.l.b16 %v300
    %v1076 = vunpack.c.l.b16 %v301
    %v1077 = vunpack.c.l.b16 %v302
    %v1078 = vunpack.c.l.b16 %v303
    %v1079 = vunpack.c.l.b16 %v304
    %v1080 = vunpack.c.l.b16 %v305
    %v1081 = vunpack.c.l.b16 %v306
    %v1082 = vunpack.c.l.b16 %v307
    %v1083 = vunpack.c.l.b16 %v308
    %v1084 = vunpack.c.l.b16 %v309
    %v1085 = vunpack.c.l.b16 %v310
    %v1086 = vunpack.c.l.b16 %v311
    %v1087 = vunpack.c.l.b16 %v312
    %v1088 = vunpack.c.l.b16 %v313
    %v1089 = vunpack.c.l.b16 %v314
    %v1090 = vunpack.c.l.b16 %v315
    %v1091 = vunpack.c.l.b16 %v316
    %v1092 = vunpack.c.l.b16 %v317
    %v1093 = vunpack.c.l.b16 %v318
    %v1094 = vunpack.c.l.b16 %v319
    %v1095 = vunpack.c.l.b16 %v320
    %v1096 = vunpack.c.l.b16 %v321
    %v1097 = vunpack.c.l.b16 %v322
    %v1098 = vunpack.c.l.b16 %v323
    %v1099 = vunpack.c.l.b16 %v324
    %v1100 = vunpack.c.l.b16 %v325
    %v1101 = vunpack.c.l.b16 %v326
    %v1102 = vunpack.c.l.b16 %v327
    %v1103 = vunpack.c.l.b16 %v328
    %v1104 = vunpack.c.l.b16 %v329
    %v1105 = vunpack.c.l.b16 %v330
    %v1106 = vunpack.c.l.b16 %v331
    %v1107 = vunpack.c.l.b16 %v332
    %v1108 = vunpack.c.l.b16 %v333
    %v1109 = vunpack.c.l.b16 %v334
    %v1110 = vunpack.c.l.b16 %v335
    %v1111 = vunpack.c.l.b16 %v336
    %v1112 = vunpack.c.l.b16 %v337
    %v1113 = vunpack.c.l.b16 %v338
    %v1114 = vunpack.c.l.b16 %v339
    %v1115 = vunpack.c.l.b16 %v340
    %v1116 = vunpack.c.l.b16 %v341
    %v1117 = vunpack.c.l.b16 %v342
    %v1118 = vunpack.c.l.b16 %v343
    %v1119 = vunpack.c.l.b16 %v344
    %v1120 = vunpack.c.l.b16 %v345
    %v1121 = vunpack.c.l.b16 %v346
    %v1122 = vunpack.c.l.b16 %v347
    %v1123 = vunpack.c.l.b16 %v348
    %v1124 = vunpack.c.l.b16 %v349
    %v1125 = vunpack.c.l.b16 %v350
    %v1126 = vunpack.c.l.b16 %v351
    %v1127 = vunpack.c.l.b16 %v352
    %v1128 = vunpack.c.l.b16 %v353
    %v1129 = vunpack.c.l.b16 %v354
    %v1130 = vunpack.c.l.b16 %v355
    %v1131 = vunpack.c.l.b16 %v356
    %v1132 = vunpack.c.l.b16 %v357
    %v1133 = vunpack.c.l.b16 %v358
    %v1134 = vunpack.c.l.b16 %v359
    %v1135 = vunpack.c.l.b16 %v360
    %v1136 = vunpack.c.l.b16 %v361
    %v1137 = vunpack.c.l.b16 %v362
    %v1138 = vunpack.c.l.b16 %v363
    %v1139 = vunpack.c.l.b16 %v364
    %v1140 = vunpack.c.l.b16 %v365
    %v1141 = vunpack.c.l.b16 %v366
    %v1142 = vunpack.c.l.b16 %v367
    %v1143 = vunpack.c.l.b16 %v368
    %v1144 = vunpack.c.l.b16 %v369
    %v1145 = vunpack.c.l.b16 %v370
    %v1146 = vunpack.c.l.b16 %v371
    %v1147 = vunpack.c.l.b16 %v372
    %v1148 = vunpack.c.l.b16 %v373
    %v1149 = vunpack.c.l.b16 %v374
    %v1150 = vunpack.c.l.b16 %v375
    %v1151 = vunpack.c.l.b16 %v376
    %v1152 = vunpack.c.l.b16 %v377
    %v1153 = vunpack.c.l.b16 %v378
    %v1154 = vunpack.c.l.b16 %v379
    %v1155 = vunpack.c.l.b16 %v380
    %v1156 = vunpack.c.l.b16 %v381
    %v1157 = vunpack.c.l.b16 %v382
    %v1158 = vunpack.c.l.b16 %v383
    %v1159 = vunpack.c.l.b16 %v384
    %v1160 = vunpack.c.l.b16 %v385
    %v1161 = vunpack.c.l.b16 %v386
    %v1162 = vunpack.c.l.b16 %v387
    %v1163 = vunpack.c.l.b16 %v388
    %v1164 = vunpack.c.l.b16 %v389
    %v1165 = vunpack.c.l.b16 %v390
    %v1166 = vunpack.c.l.b16 %v391
    %v1167 = vunpack.c.l.b16 %v392
    %v1168 = vunpack.c.l.b16 %v393
    %v1169 = vunpack.c.l.b16 %v394
    %v1170 = vunpack.c.l.b16 %v395
    %v1171 = vunpack.c.l.b16 %v396
    %v1172 = vunpack.c.l.b16 %v397
    %v1173 = vunpack.c.l.b16 %v398
    %v1174 = vunpack.c.l.b16 %v399
    %v1175 = vunpack.c.l.b16 %v400
    %v1176 = vunpack.c.l.b16 %v401
    %v1177 = vunpack.c.l.b16 %v402
    %v1178 = vunpack.c.l.b16 %v403
    %v1179 = vunpack.c.l.b16 %v404
    %v1180 = vunpack.c.l.b16 %v405
    %v1181 = vunpack.c.l.b16 %v406
    %v1182 = vunpack.c.l.b16 %v407
    %v1183 = vunpack.c.l.b16 %v408
    %v1184 = vunpack.c.l.b16 %v409
    %v1185 = vunpack.c.l.b16 %v410
    %v1186 = vunpack.c.l.b16 %v411
    %v1187 = vunpack.c.l.b16 %v412
    %v1188 = vunpack.c.l.b16 %v413
    %v1189 = vunpack.c.l.b16 %v414
    %v1190 = vunpack.c.l.b16 %v415
    %v1191 = vunpack.c.l.b16 %v416
    %v1192 = vunpack.c.l.b16 %v417
    %v1193 = vunpack.c.l.b16 %v418
    %v1194 = vunpack.c.l.b16 %v419
    %v1195 = vunpack.c.l.b16 %v420
    %v1196 = vunpack.c.l.b16 %v421
    %v1197 = vunpack.c.l.b16 %v422
    %v1198 = vunpack.c.l.b16 %v423
    %v1199 = vunpack.c.l.b16 %v424
    %v1200 = vunpack.c.l.b16 %v425
    %v1201 = vunpack.c.l.b16 %v426
    %v1202 = vunpack.c.l.b16 %v427
    %v1203 = vunpack.c.l.b16 %v428
    %v1204 = vunpack.c.l.b16 %v429
    %v1205 = vunpack.c.l.b16 %v430
    %v1206 = vunpack.c.l.b16 %v431
    %v1207 = vunpack.c.l.b16 %v432
    %v1208 = vunpack.c.l.b16 %v433
    %v1209 = vunpack.c.l.b16 %v434
    %v1210 = vunpack.c.l.b16 %v435
    %v1211 = vunpack.c.l.b16 %v436
    %v1212 = vunpack.c.l.b16 %v437
    %v1213 = vunpack.c.l.b16 %v438
    %v1214 = vunpack.c.l.b16 %v439
    %v1215 = vunpack.c.l.b16 %v440
    %v1216 = vunpack.c.l.b16 %v441
    %v1217 = vunpack.c.l.b16 %v442
    %v1218 = vunpack.c.l.b16 %v443
    %v1219 = vunpack.c.l.b16 %v444
    %v1220 = vunpack.c.l.b16 %v445
    %v1221 = vunpack.c.l.b16 %v446
    %v1222 = vunpack.c.l.b16 %v447
    %v1223 = vunpack.c.l.b16 %v448
    %v1224 = vunpack.c.l.b16 %v449
    %v1225 = vunpack.c.l.b16 %v450
    %v1226 = vunpack.c.l.b16 %v451
    %v1227 = vunpack.c.l.b16 %v452
    %v1228 = vunpack.c.l.b16 %v453
    %v1229 = vunpack.c.l.b16 %v454
    %v1230 = vunpack.c.l.b16 %v455
    %v1231 = vunpack.c.l.b16 %v456
    %v1232 = vunpack.c.l.b16 %v457
    %v1233 = vunpack.c.l.b16 %v458
    %v1234 = vunpack.c.l.b16 %v459
    %v1235 = vunpack.c.l.b16 %v460
    %v1236 = vunpack.c.l.b16 %v461
    %v1237 = vunpack.c.l.b16 %v462
    %v1238 = vunpack.c.l.b16 %v463
    %v1239 = vunpack.c.l.b16 %v464
    %v1240 = vunpack.c.l.b16 %v465
    %v1241 = vunpack.c.l.b16 %v466
    %v1242 = vunpack.c.l.b16 %v467
    %v1243 = vunpack.c.l.b16 %v468
    %v1244 = vunpack.c.l.b16 %v469
    %v1245 = vunpack.c.l.b16 %v470
    %v1246 = vunpack.c.l.b16 %v471
    %v1247 = vunpack.c.l.b16 %v472
    %v1248 = vunpack.c.l.b16 %v473
    %v1249 = vunpack.c.l.b16 %v474
    %v1250 = vunpack.c.l.b16 %v475
    %v1251 = vunpack.c.l.b16 %v476
    %v1252 = vunpack.c.l.b16 %v477
    %v1253 = vunpack.c.l.b16 %v478
    %v1254 = vunpack.c.l.b16 %v479
    %v1255 = vunpack.c.l.b16 %v480
    %v1256 = vunpack.c.l.b16 %v481
    %v1257 = vunpack.c.l.b16 %v482
    %v1258 = vunpack.c.l.b16 %v483
    %v1259 = vpack.c.b16 %v876, %v875
    %v1260 = vpack.c.b16 %v878, %v877
    %v1261 = vpack.c.b16 %v880, %v879
    %v1262 = vpack.c.b16 %v882, %v881
    %v1263 = vpack.c.b16 %v884, %v883
    %v1264 = vpack.c.b16 %v886, %v885
    %v1265 = vpack.c.b16 %v888, %v887
    %v1266 = vpack.c.b16 %v890, %v889
    %v1267 = vpack.c.b16 %v892, %v891
    %v1268 = vpack.c.b16 %v894, %v893
    %v1269 = vpack.c.b16 %v896, %v895
    %v1270 = vpack.c.b16 %v898, %v897
    %v1271 = vpack.c.b16 %v900, %v899
    %v1272 = vpack.c.b16 %v902, %v901
    %v1273 = vpack.c.b16 %v904, %v903
    %v1274 = vpack.c.b16 %v906, %v905
    %v1275 = vpack.c.b16 %v908, %v907
    %v1276 = vpack.c.b16 %v910, %v909
    %v1277 = vpack.c.b16 %v912, %v911
    %v1278 = vpack.c.b16 %v914, %v913
    %v1279 = vpack.c.b16 %v916, %v915
    %v1280 = vpack.c.b16 %v918, %v917
    %v1281 = vpack.c.b16 %v920, %v919
    %v1282 = vpack.c.b16 %v922, %v921
    %v1283 = vpack.c.b16 %v924, %v923
    %v1284 = vpack.c.b16 %v926, %v925
    %v1285 = vpack.c.b16 %v928, %v927
    %v1286 = vpack.c.b16 %v930, %v929
    %v1287 = vpack.c.b16 %v932, %v931
    %v1288 = vpack.c.b16 %v934, %v933
    %v1289 = vpack.c.b16 %v936, %v935
    %v1290 = vpack.c.b16 %v938, %v937
    %v1291 = vpack.c.b16 %v940, %v939
    %v1292 = vpack.c.b16 %v942, %v941
    %v1293 = vpack.c.b16 %v944, %v943
    %v1294 = vpack.c.b16 %v946, %v945
    %v1295 = vpack.c.b16 %v948, %v947
    %v1296 = vpack.c.b16 %v950, %v949
    %v1297 = vpack.c.b16 %v952, %v951
    %v1298 = vpack.c.b16 %v954, %v953
    %v1299 = vpack.c.b16 %v956, %v955
    %v1300 = vpack.c.b16 %v958, %v957
    %v1301 = vpack.c.b16 %v960, %v959
    %v1302 = vpack.c.b16 %v962, %v961
    %v1303 = vpack.c.b16 %v964, %v963
    %v1304 = vpack.c.b16 %v966, %v965
    %v1305 = vpack.c.b16 %v968, %v967
    %v1306 = vpack.c.b16 %v970, %v969
    %v1307 = vpack.c.b16 %v972, %v971
    %v1308 = vpack.c.b16 %v974, %v973
    %v1309 = vpack.c.b16 %v976, %v975
    %v1310 = vpack.c.b16 %v978, %v977
    %v1311 = vpack.c.b16 %v980, %v979
    %v1312 = vpack.c.b16 %v982, %v981
    %v1313 = vpack.c.b16 %v984, %v983
    %v1314 = vpack.c.b16 %v986, %v985
    %v1315 = vpack.c.b16 %v988, %v987
    %v1316 = vpack.c.b16 %v990, %v989
    %v1317 = vpack.c.b16 %v992, %v991
    %v1318 = vpack.c.b16 %v994, %v993
    %v1319 = vpack.c.b16 %v996, %v995
    %v1320 = vpack.c.b16 %v998, %v997
    %v1321 = vpack.c.b16 %v1000, %v999
    %v1322 = vpack.c.b16 %v1002, %v1001
    %v1323 = vpack.c.b16 %v1004, %v1003
    %v1324 = vpack.c.b16 %v1006, %v1005
    %v1325 = vpack.c.b16 %v1008, %v1007
    %v1326 = vpack.c.b16 %v1010, %v1009
    %v1327 = vpack.c.b16 %v1012, %v1011
    %v1328 = vpack.c.b16 %v1014, %v1013
    %v1329 = vpack.c.b16 %v1016, %v1015
    %v1330 = vpack.c.b16 %v1018, %v1017
    %v1331 = vpack.c.b16 %v1020, %v1019
    %v1332 = vpack.c.b16 %v1022, %v1021
    %v1333 = vpack.c.b16 %v1024, %v1023
    %v1334 = vpack.c.b16 %v1026, %v1025
    %v1335 = vpack.c.b16 %v1028, %v1027
    %v1336 = vpack.c.b16 %v1030, %v1029
    %v1337 = vpack.c.b16 %v1032, %v1031
    %v1338 = vpack.c.b16 %v1034, %v1033
    %v1339 = vpack.c.b16 %v1036, %v1035
    %v1340 = vpack.c.b16 %v1038, %v1037
    %v1341 = vpack.c.b16 %v1040, %v1039
    %v1342 = vpack.c.b16 %v1042, %v1041
    %v1343 = vpack.c.b16 %v1044, %v1043
    %v1344 = vpack.c.b16 %v1046, %v1045
    %v1345 = vpack.c.b16 %v1048, %v1047
    %v1346 = vpack.c.b16 %v1050, %v1049
    %v1347 = vpack.c.b16 %v1052, %v1051
    %v1348 = vpack.c.b16 %v1054, %v1053
    %v1349 = vpack.c.b16 %v1056, %v1055
    %v1350 = vpack.c.b16 %v1058, %v1057
    %v1351 = vpack.c.b16 %v1060, %v1059
    %v1352 = vpack.c.b16 %v1062, %v1061
    %v1353 = vpack.c.b16 %v1064, %v1063
    %v1354 = vpack.c.b16 %v1066, %v1065
    %v1355 = vpack.c.b16 %v1068, %v1067
    %v1356 = vpack.c.b16 %v1070, %v1069
    %v1357 = vpack.c.b16 %v1072, %v1071
    %v1358 = vpack.c.b16 %v1074, %v1073
    %v1359 = vpack.c.b16 %v1076, %v1075
    %v1360 = vpack.c.b16 %v1078, %v1077
    %v1361 = vpack.c.b16 %v1080, %v1079
    %v1362 = vpack.c.b16 %v1082, %v1081
    %v1363 = vpack.c.b16 %v1084, %v1083
    %v1364 = vpack.c.b16 %v1086, %v1085
    %v1365 = vpack.c.b16 %v1088, %v1087
    %v1366 = vpack.c.b16 %v1090, %v1089
    %v1367 = vpack.c.b16 %v1092, %v1091
    %v1368 = vpack.c.b16 %v1094, %v1093
    %v1369 = vpack.c.b16 %v1096, %v1095
    %v1370 = vpack.c.b16 %v1098, %v1097
    %v1371 = vpack.c.b16 %v1100, %v1099
    %v1372 = vpack.c.b16 %v1102, %v1101
    %v1373 = vpack.c.b16 %v1104, %v1103
    %v1374 = vpack.c.b16 %v1106, %v1105
    %v1375 = vpack.c.b16 %v1108, %v1107
    %v1376 = vpack.c.b16 %v1110, %v1109
    %v1377 = vpack.c.b16 %v1112, %v1111
    %v1378 = vpack.c.b16 %v1114, %v1113
    %v1379 = vpack.c.b16 %v1116, %v1115
    %v1380 = vpack.c.b16 %v1118, %v1117
    %v1381 = vpack.c.b16 %v1120, %v1119
    %v1382 = vpack.c.b16 %v1122, %v1121
    %v1383 = vpack.c.b16 %v1124, %v1123
    %v1384 = vpack.c.b16 %v1126, %v1125
    %v1385 = vpack.c.b16 %v1128, %v1127
    %v1386 = vpack.c.b16 %v1130, %v1129
    %v1387 = vpack.c.b16 %v1132, %v1131
    %v1388 = vpack.c.b16 %v1134, %v1133
    %v1389 = vpack.c.b16 %v1136, %v1135
    %v1390 = vpack.c.b16 %v1138, %v1137
    %v1391 = vpack.c.b16 %v1140, %v1139
    %v1392 = vpack.c.b16 %v1142, %v1141
    %v1393 = vpack.c.b16 %v1144, %v1143
    %v1394 = vpack.c.b16 %v1146, %v1145
    %v1395 = vpack.c.b16 %v1148, %v1147
    %v1396 = vpack.c.b16 %v1150, %v1149
    %v1397 = vpack.c.b16 %v1152, %v1151
    %v1398 = vpack.c.b16 %v1154, %v1153
    %v1399 = vpack.c.b16 %v1156, %v1155
    %v1400 = vpack.c.b16 %v1158, %v1157
    %v1401 = vpack.c.b16 %v1160, %v1159
    %v1402 = vpack.c.b16 %v1162, %v1161
    %v1403 = vpack.c.b16 %v1164, %v1163
    %v1404 = vpack.c.b16 %v1166, %v1165
    %v1405 = vpack.c.b16 %v1168, %v1167
    %v1406 = vpack.c.b16 %v1170, %v1169
    %v1407 = vpack.c.b16 %v1172, %v1171
    %v1408 = vpack.c.b16 %v1174, %v1173
    %v1409 = vpack.c.b16 %v1176, %v1175
    %v1410 = vpack.c.b16 %v1178, %v1177
    %v1411 = vpack.c.b16 %v1180, %v1179
    %v1412 = vpack.c.b16 %v1182, %v1181
    %v1413 = vpack.c.b16 %v1184, %v1183
    %v1414 = vpack.c.b16 %v1186, %v1185
    %v1415 = vpack.c.b16 %v1188, %v1187
    %v1416 = vpack.c.b16 %v1190, %v1189
    %v1417 = vpack.c.b16 %v1192, %v1191
    %v1418 = vpack.c.b16 %v1194, %v1193
    %v1419 = vpack.c.b16 %v1196, %v1195
    %v1420 = vpack.c.b16 %v1198, %v1197
    %v1421 = vpack.c.b16 %v1200, %v1199
    %v1422 = vpack.c.b16 %v1202, %v1201
    %v1423 = vpack.c.b16 %v1204, %v1203
    %v1424 = vpack.c.b16 %v1206, %v1205
    %v1425 = vpack.c.b16 %v1208, %v1207
    %v1426 = vpack.c.b16 %v1210, %v1209
    %v1427 = vpack.c.b16 %v1212, %v1211
    %v1428 = vpack.c.b16 %v1214, %v1213
    %v1429 = vpack.c.b16 %v1216, %v1215
    %v1430 = vpack.c.b16 %v1218, %v1217
    %v1431 = vpack.c.b16 %v1220, %v1219
    %v1432 = vpack.c.b16 %v1222, %v1221
    %v1433 = vpack.c.b16 %v1224, %v1223
    %v1434 = vpack.c.b16 %v1226, %v1225
    %v1435 = vpack.c.b16 %v1228, %v1227
    %v1436 = vpack.c.b16 %v1230, %v1229
    %v1437 = vpack.c.b16 %v1232, %v1231
    %v1438 = vpack.c.b16 %v1234, %v1233
    %v1439 = vpack.c.b16 %v1236, %v1235
    %v1440 = vpack.c.b16 %v1238, %v1237
    %v1441 = vpack.c.b16 %v1240, %v1239
    %v1442 = vpack.c.b16 %v1242, %v1241
    %v1443 = vpack.c.b16 %v1244, %v1243
    %v1444 = vpack.c.b16 %v1246, %v1245
    %v1445 = vpack.c.b16 %v1248, %v1247
    %v1446 = vpack.c.b16 %v1250, %v1249
    %v1447 = vpack.c.b16 %v1252, %v1251
    %v1448 = vpack.c.b16 %v1254, %v1253
    %v1449 = vpack.c.b16 %v1256, %v1255
    %v1450 = vpack.c.b16 %v1258, %v1257
    %1643 = vmatprep.subr.bf16.mxu0 0
    %1644 = vmatpush1.bf16.msra.mxu0 %v1259
    %1645 = vmatprep.subr.bf16.mxu0 0
    %1646 = vmatpush1.bf16.msra.mxu0 %v1260
    %1647 = vmatprep.subr.bf16.mxu0 0
    %1648 = vmatpush1.bf16.msra.mxu0 %v1261
    %1649 = vmatprep.subr.bf16.mxu0 0
    %1650 = vmatpush1.bf16.msra.mxu0 %v1262
    %1651 = vmatprep.subr.bf16.mxu0 0
    %1652 = vmatpush1.bf16.msra.mxu0 %v1263
    %1653 = vmatprep.subr.bf16.mxu0 0
    %1654 = vmatpush1.bf16.msra.mxu0 %v1264
    %1655 = vmatprep.subr.bf16.mxu0 0
    %1656 = vmatpush1.bf16.msra.mxu0 %v1265
    %1657 = vmatprep.subr.bf16.mxu0 0
    %1658 = vmatpush1.bf16.msra.mxu0 %v1266
    %1659 = vmatprep.subr.bf16.mxu0 0
    %1660 = vmatpush1.bf16.msra.mxu0 %v1267
    %1661 = vmatprep.subr.bf16.mxu0 0
    %1662 = vmatpush1.bf16.msra.mxu0 %v1268
    %1663 = vmatprep.subr.bf16.mxu0 0
    %1664 = vmatpush1.bf16.msra.mxu0 %v1269
    %1665 = vmatprep.subr.bf16.mxu0 0
    %1666 = vmatpush1.bf16.msra.mxu0 %v1270
    %1667 = vmatprep.subr.bf16.mxu0 0
    %1668 = vmatpush1.bf16.msra.mxu0 %v1271
    %1669 = vmatprep.subr.bf16.mxu0 0
    %1670 = vmatpush1.bf16.msra.mxu0 %v1272
    %1671 = vmatprep.subr.bf16.mxu0 0
    %1672 = vmatpush1.bf16.msra.mxu0 %v1273
    %1673 = vmatprep.subr.bf16.mxu0 0
    %1674 = vmatpush1.bf16.msra.mxu0 %v1274
    %1675 = vmatprep.mubr.bf16.mxu0 %v77
    %1676 = vmatmul.mubr.bf16.gmra.mrb[0].mxu0 %v76
    %v1677 = vpop.f32.mrb[0].mxu0
    %v1678 = vadd.f32 %v489, %v1677
    %v1679 = vpop.f32.mrb[0].mxu0
    %v1680 = vpop.f32.mrb[0].mxu0
    %v1681 = vadd.f32 %v489, %v1680
    %v1682 = vpop.f32.mrb[0].mxu0
    %1683 = vdwg.mxu0
    %1684 = vmatprep.subr.bf16.mxu0 0
    %1685 = vmatpush1.bf16.msra.mxu0 %v1275
    %1686 = vmatprep.subr.bf16.mxu0 0
    %1687 = vmatpush1.bf16.msra.mxu0 %v1276
    %1688 = vmatprep.subr.bf16.mxu0 0
    %1689 = vmatpush1.bf16.msra.mxu0 %v1277
    %1690 = vmatprep.subr.bf16.mxu0 0
    %1691 = vmatpush1.bf16.msra.mxu0 %v1278
    %1692 = vmatprep.subr.bf16.mxu0 0
    %1693 = vmatpush1.bf16.msra.mxu0 %v1279
    %1694 = vmatprep.subr.bf16.mxu0 0
    %1695 = vmatpush1.bf16.msra.mxu0 %v1280
    %1696 = vmatprep.subr.bf16.mxu0 0
    %1697 = vmatpush1.bf16.msra.mxu0 %v1281
    %1698 = vmatprep.subr.bf16.mxu0 0
    %1699 = vmatpush1.bf16.msra.mxu0 %v1282
    %1700 = vmatprep.subr.bf16.mxu0 0
    %1701 = vmatpush1.bf16.msra.mxu0 %v1283
    %1702 = vmatprep.subr.bf16.mxu0 0
    %1703 = vmatpush1.bf16.msra.mxu0 %v1284
    %1704 = vmatprep.subr.bf16.mxu0 0
    %1705 = vmatpush1.bf16.msra.mxu0 %v1285
    %1706 = vmatprep.subr.bf16.mxu0 0
    %1707 = vmatpush1.bf16.msra.mxu0 %v1286
    %1708 = vmatprep.subr.bf16.mxu0 0
    %1709 = vmatpush1.bf16.msra.mxu0 %v1287
    %1710 = vmatprep.subr.bf16.mxu0 0
    %1711 = vmatpush1.bf16.msra.mxu0 %v1288
    %1712 = vmatprep.subr.bf16.mxu0 0
    %1713 = vmatpush1.bf16.msra.mxu0 %v1289
    %1714 = vmatprep.subr.bf16.mxu0 0
    %1715 = vmatpush1.bf16.msra.mxu0 %v1290
    %1716 = vmatprep.mubr.bf16.mxu0 %v79
    %1717 = vmatmul.mubr.bf16.gmra.mrb[0].mxu0 %v78
    %v1718 = vpop.f32.mrb[0].mxu0
    %v1719 = vadd.f32 %v1678, %v1718
    %v1720 = vpop.f32.mrb[0].mxu0
    %v1721 = vpop.f32.mrb[0].mxu0
    %v1722 = vadd.f32 %v1681, %v1721
    %v1723 = vpop.f32.mrb[0].mxu0
    %1724 = vdwg.mxu0
    %1725 = vmatprep.subr.bf16.mxu0 0
    %1726 = vmatpush1.bf16.msra.mxu0 %v1291
    %1727 = vmatprep.subr.bf16.mxu0 0
    %1728 = vmatpush1.bf16.msra.mxu0 %v1292
    %1729 = vmatprep.subr.bf16.mxu0 0
    %1730 = vmatpush1.bf16.msra.mxu0 %v1293
    %1731 = vmatprep.subr.bf16.mxu0 0
    %1732 = vmatpush1.bf16.msra.mxu0 %v1294
    %1733 = vmatprep.subr.bf16.mxu0 0
    %1734 = vmatpush1.bf16.msra.mxu0 %v1295
    %1735 = vmatprep.subr.bf16.mxu0 0
    %1736 = vmatpush1.bf16.msra.mxu0 %v1296
    %1737 = vmatprep.subr.bf16.mxu0 0
    %1738 = vmatpush1.bf16.msra.mxu0 %v1297
    %1739 = vmatprep.subr.bf16.mxu0 0
    %1740 = vmatpush1.bf16.msra.mxu0 %v1298
    %1741 = vmatprep.subr.bf16.mxu0 0
    %1742 = vmatpush1.bf16.msra.mxu0 %v1299
    %1743 = vmatprep.subr.bf16.mxu0 0
    %1744 = vmatpush1.bf16.msra.mxu0 %v1300
    %1745 = vmatprep.subr.bf16.mxu0 0
    %1746 = vmatpush1.bf16.msra.mxu0 %v1301
    %1747 = vmatprep.subr.bf16.mxu0 0
    %1748 = vmatpush1.bf16.msra.mxu0 %v1302
    %1749 = vmatprep.subr.bf16.mxu0 0
    %1750 = vmatpush1.bf16.msra.mxu0 %v1303
    %1751 = vmatprep.subr.bf16.mxu0 0
    %1752 = vmatpush1.bf16.msra.mxu0 %v1304
    %1753 = vmatprep.subr.bf16.mxu0 0
    %1754 = vmatpush1.bf16.msra.mxu0 %v1305
    %1755 = vmatprep.subr.bf16.mxu0 0
    %1756 = vmatpush1.bf16.msra.mxu0 %v1306
    %1757 = vmatprep.mubr.bf16.mxu0 %v81
    %1758 = vmatmul.mubr.bf16.gmra.mrb[0].mxu0 %v80
    %v1759 = vpop.f32.mrb[0].mxu0
    %v1760 = vadd.f32 %v1719, %v1759
    %v1761 = vpop.f32.mrb[0].mxu0
    %v1762 = vpop.f32.mrb[0].mxu0
    %v1763 = vadd.f32 %v1722, %v1762
    %v1764 = vpop.f32.mrb[0].mxu0
    %1765 = vdwg.mxu0
    %1766 = vmatprep.subr.bf16.mxu0 0
    %1767 = vmatpush1.bf16.msra.mxu0 %v1307
    %1768 = vmatprep.subr.bf16.mxu0 0
    %1769 = vmatpush1.bf16.msra.mxu0 %v1308
    %1770 = vmatprep.subr.bf16.mxu0 0
    %1771 = vmatpush1.bf16.msra.mxu0 %v1309
    %1772 = vmatprep.subr.bf16.mxu0 0
    %1773 = vmatpush1.bf16.msra.mxu0 %v1310
    %1774 = vmatprep.subr.bf16.mxu0 0
    %1775 = vmatpush1.bf16.msra.mxu0 %v1311
    %1776 = vmatprep.subr.bf16.mxu0 0
    %1777 = vmatpush1.bf16.msra.mxu0 %v1312
    %1778 = vmatprep.subr.bf16.mxu0 0
    %1779 = vmatpush1.bf16.msra.mxu0 %v1313
    %1780 = vmatprep.subr.bf16.mxu0 0
    %1781 = vmatpush1.bf16.msra.mxu0 %v1314
    %1782 = vmatprep.subr.bf16.mxu0 0
    %1783 = vmatpush1.bf16.msra.mxu0 %v1315
    %1784 = vmatprep.subr.bf16.mxu0 0
    %1785 = vmatpush1.bf16.msra.mxu0 %v1316
    %1786 = vmatprep.subr.bf16.mxu0 0
    %1787 = vmatpush1.bf16.msra.mxu0 %v1317
    %1788 = vmatprep.subr.bf16.mxu0 0
    %1789 = vmatpush1.bf16.msra.mxu0 %v1318
    %1790 = vmatprep.subr.bf16.mxu0 0
    %1791 = vmatpush1.bf16.msra.mxu0 %v1319
    %1792 = vmatprep.subr.bf16.mxu0 0
    %1793 = vmatpush1.bf16.msra.mxu0 %v1320
    %1794 = vmatprep.subr.bf16.mxu0 0
    %1795 = vmatpush1.bf16.msra.mxu0 %v1321
    %1796 = vmatprep.subr.bf16.mxu0 0
    %1797 = vmatpush1.bf16.msra.mxu0 %v1322
    %1798 = vmatprep.mubr.bf16.mxu0 %v83
    %1799 = vmatmul.mubr.bf16.gmra.mrb[0].mxu0 %v82
    %v1800 = vpop.f32.mrb[0].mxu0
    %v1801 = vadd.f32 %v1760, %v1800
    %v1802 = vpop.f32.mrb[0].mxu0
    %v1803 = vpop.f32.mrb[0].mxu0
    %v1804 = vadd.f32 %v1763, %v1803
    %v1805 = vpop.f32.mrb[0].mxu0
    %1806 = vdwg.mxu0
    %1807 = vmatprep.subr.bf16.mxu0 0
    %1808 = vmatpush1.bf16.msra.mxu0 %v1323
    %1809 = vmatprep.subr.bf16.mxu0 0
    %1810 = vmatpush1.bf16.msra.mxu0 %v1324
    %1811 = vmatprep.subr.bf16.mxu0 0
    %1812 = vmatpush1.bf16.msra.mxu0 %v1325
    %1813 = vmatprep.subr.bf16.mxu0 0
    %1814 = vmatpush1.bf16.msra.mxu0 %v1326
    %1815 = vmatprep.subr.bf16.mxu0 0
    %1816 = vmatpush1.bf16.msra.mxu0 %v1327
    %1817 = vmatprep.subr.bf16.mxu0 0
    %1818 = vmatpush1.bf16.msra.mxu0 %v1328
    %1819 = vmatprep.subr.bf16.mxu0 0
    %1820 = vmatpush1.bf16.msra.mxu0 %v1329
    %1821 = vmatprep.subr.bf16.mxu0 0
    %1822 = vmatpush1.bf16.msra.mxu0 %v1330
    %1823 = vmatprep.subr.bf16.mxu0 0
    %1824 = vmatpush1.bf16.msra.mxu0 %v1331
    %1825 = vmatprep.subr.bf16.mxu0 0
    %1826 = vmatpush1.bf16.msra.mxu0 %v1332
    %1827 = vmatprep.subr.bf16.mxu0 0
    %1828 = vmatpush1.bf16.msra.mxu0 %v1333
    %1829 = vmatprep.subr.bf16.mxu0 0
    %1830 = vmatpush1.bf16.msra.mxu0 %v1334
    %1831 = vmatprep.subr.bf16.mxu0 0
    %1832 = vmatpush1.bf16.msra.mxu0 %v1335
    %1833 = vmatprep.subr.bf16.mxu0 0
    %1834 = vmatpush1.bf16.msra.mxu0 %v1336
    %1835 = vmatprep.subr.bf16.mxu0 0
    %1836 = vmatpush1.bf16.msra.mxu0 %v1337
    %1837 = vmatprep.subr.bf16.mxu0 0
    %1838 = vmatpush1.bf16.msra.mxu0 %v1338
    %1839 = vmatprep.mubr.bf16.mxu0 %v85
    %1840 = vmatmul.mubr.bf16.gmra.mrb[0].mxu0 %v84
    %v1841 = vpop.f32.mrb[0].mxu0
    %v1842 = vadd.f32 %v1801, %v1841
    %v1843 = vpop.f32.mrb[0].mxu0
    %v1844 = vpop.f32.mrb[0].mxu0
    %v1845 = vadd.f32 %v1804, %v1844
    %v1846 = vpop.f32.mrb[0].mxu0
    %1847 = vdwg.mxu0
    %1848 = vmatprep.subr.bf16.mxu0 0
    %1849 = vmatpush1.bf16.msra.mxu0 %v1339
    %1850 = vmatprep.subr.bf16.mxu0 0
    %1851 = vmatpush1.bf16.msra.mxu0 %v1340
    %1852 = vmatprep.subr.bf16.mxu0 0
    %1853 = vmatpush1.bf16.msra.mxu0 %v1341
    %1854 = vmatprep.subr.bf16.mxu0 0
    %1855 = vmatpush1.bf16.msra.mxu0 %v1342
    %1856 = vmatprep.subr.bf16.mxu0 0
    %1857 = vmatpush1.bf16.msra.mxu0 %v1343
    %1858 = vmatprep.subr.bf16.mxu0 0
    %1859 = vmatpush1.bf16.msra.mxu0 %v1344
    %1860 = vmatprep.subr.bf16.mxu0 0
    %1861 = vmatpush1.bf16.msra.mxu0 %v1345
    %1862 = vmatprep.subr.bf16.mxu0 0
    %1863 = vmatpush1.bf16.msra.mxu0 %v1346
    %1864 = vmatprep.subr.bf16.mxu0 0
    %1865 = vmatpush1.bf16.msra.mxu0 %v1347
    %1866 = vmatprep.subr.bf16.mxu0 0
    %1867 = vmatpush1.bf16.msra.mxu0 %v1348
    %1868 = vmatprep.subr.bf16.mxu0 0
    %1869 = vmatpush1.bf16.msra.mxu0 %v1349
    %1870 = vmatprep.subr.bf16.mxu0 0
    %1871 = vmatpush1.bf16.msra.mxu0 %v1350
    %1872 = vmatprep.subr.bf16.mxu0 0
    %1873 = vmatpush1.bf16.msra.mxu0 %v1351
    %1874 = vmatprep.subr.bf16.mxu0 0
    %1875 = vmatpush1.bf16.msra.mxu0 %v1352
    %1876 = vmatprep.subr.bf16.mxu0 0
    %1877 = vmatpush1.bf16.msra.mxu0 %v1353
    %1878 = vmatprep.subr.bf16.mxu0 0
    %1879 = vmatpush1.bf16.msra.mxu0 %v1354
    %1880 = vmatprep.mubr.bf16.mxu0 %v87
    %1881 = vmatmul.mubr.bf16.gmra.mrb[0].mxu0 %v86
    %v1882 = vpop.f32.mrb[0].mxu0
    %v1883 = vadd.f32 %v1842, %v1882
    %v1884 = vpop.f32.mrb[0].mxu0
    %v1885 = vpop.f32.mrb[0].mxu0
    %v1886 = vadd.f32 %v1845, %v1885
    %v1887 = vpop.f32.mrb[0].mxu0
    %1888 = vdwg.mxu0
    %1889 = vmatprep.subr.bf16.mxu0 0
    %1890 = vmatpush1.bf16.msra.mxu0 %v1355
    %1891 = vmatprep.subr.bf16.mxu0 0
    %1892 = vmatpush1.bf16.msra.mxu0 %v1356
    %1893 = vmatprep.subr.bf16.mxu0 0
    %1894 = vmatpush1.bf16.msra.mxu0 %v1357
    %1895 = vmatprep.subr.bf16.mxu0 0
    %1896 = vmatpush1.bf16.msra.mxu0 %v1358
    %1897 = vmatprep.subr.bf16.mxu0 0
    %1898 = vmatpush1.bf16.msra.mxu0 %v1359
    %1899 = vmatprep.subr.bf16.mxu0 0
    %1900 = vmatpush1.bf16.msra.mxu0 %v1360
    %1901 = vmatprep.subr.bf16.mxu0 0
    %1902 = vmatpush1.bf16.msra.mxu0 %v1361
    %1903 = vmatprep.subr.bf16.mxu0 0
    %1904 = vmatpush1.bf16.msra.mxu0 %v1362
    %1905 = vmatprep.subr.bf16.mxu0 0
    %1906 = vmatpush1.bf16.msra.mxu0 %v1363
    %1907 = vmatprep.subr.bf16.mxu0 0
    %1908 = vmatpush1.bf16.msra.mxu0 %v1364
    %1909 = vmatprep.subr.bf16.mxu0 0
    %1910 = vmatpush1.bf16.msra.mxu0 %v1365
    %1911 = vmatprep.subr.bf16.mxu0 0
    %1912 = vmatpush1.bf16.msra.mxu0 %v1366
    %1913 = vmatprep.subr.bf16.mxu0 0
    %1914 = vmatpush1.bf16.msra.mxu0 %v1367
    %1915 = vmatprep.subr.bf16.mxu0 0
    %1916 = vmatpush1.bf16.msra.mxu0 %v1368
    %1917 = vmatprep.subr.bf16.mxu0 0
    %1918 = vmatpush1.bf16.msra.mxu0 %v1369
    %1919 = vmatprep.subr.bf16.mxu0 0
    %1920 = vmatpush1.bf16.msra.mxu0 %v1370
    %1921 = vmatprep.mubr.bf16.mxu0 %v89
    %1922 = vmatmul.mubr.bf16.gmra.mrb[0].mxu0 %v88
    %v1923 = vpop.f32.mrb[0].mxu0
    %v1924 = vadd.f32 %v1883, %v1923
    %v1925 = vpop.f32.mrb[0].mxu0
    %v1926 = vpop.f32.mrb[0].mxu0
    %v1927 = vadd.f32 %v1886, %v1926
    %v1928 = vpop.f32.mrb[0].mxu0
    %1929 = vdwg.mxu0
    %1930 = vmatprep.subr.bf16.mxu0 0
    %1931 = vmatpush1.bf16.msra.mxu0 %v1371
    %1932 = vmatprep.subr.bf16.mxu0 0
    %1933 = vmatpush1.bf16.msra.mxu0 %v1372
    %1934 = vmatprep.subr.bf16.mxu0 0
    %1935 = vmatpush1.bf16.msra.mxu0 %v1373
    %1936 = vmatprep.subr.bf16.mxu0 0
    %1937 = vmatpush1.bf16.msra.mxu0 %v1374
    %1938 = vmatprep.subr.bf16.mxu0 0
    %1939 = vmatpush1.bf16.msra.mxu0 %v1375
    %1940 = vmatprep.subr.bf16.mxu0 0
    %1941 = vmatpush1.bf16.msra.mxu0 %v1376
    %1942 = vmatprep.subr.bf16.mxu0 0
    %1943 = vmatpush1.bf16.msra.mxu0 %v1377
    %1944 = vmatprep.subr.bf16.mxu0 0
    %1945 = vmatpush1.bf16.msra.mxu0 %v1378
    %1946 = vmatprep.subr.bf16.mxu0 0
    %1947 = vmatpush1.bf16.msra.mxu0 %v1379
    %1948 = vmatprep.subr.bf16.mxu0 0
    %1949 = vmatpush1.bf16.msra.mxu0 %v1380
    %1950 = vmatprep.subr.bf16.mxu0 0
    %1951 = vmatpush1.bf16.msra.mxu0 %v1381
    %1952 = vmatprep.subr.bf16.mxu0 0
    %1953 = vmatpush1.bf16.msra.mxu0 %v1382
    %1954 = vmatprep.subr.bf16.mxu0 0
    %1955 = vmatpush1.bf16.msra.mxu0 %v1383
    %1956 = vmatprep.subr.bf16.mxu0 0
    %1957 = vmatpush1.bf16.msra.mxu0 %v1384
    %1958 = vmatprep.subr.bf16.mxu0 0
    %1959 = vmatpush1.bf16.msra.mxu0 %v1385
    %1960 = vmatprep.subr.bf16.mxu0 0
    %1961 = vmatpush1.bf16.msra.mxu0 %v1386
    %1962 = vmatprep.mubr.bf16.mxu0 %v91
    %1963 = vmatmul.mubr.bf16.gmra.mrb[0].mxu0 %v90
    %v1964 = vpop.f32.mrb[0].mxu0
    %v1965 = vadd.f32 %v1924, %v1964
    %v1966 = vpop.f32.mrb[0].mxu0
    %v1967 = vpop.f32.mrb[0].mxu0
    %v1968 = vadd.f32 %v1927, %v1967
    %v1969 = vpop.f32.mrb[0].mxu0
    %1970 = vdwg.mxu0
    %1971 = vmatprep.subr.bf16.mxu0 0
    %1972 = vmatpush1.bf16.msra.mxu0 %v1387
    %1973 = vmatprep.subr.bf16.mxu0 0
    %1974 = vmatpush1.bf16.msra.mxu0 %v1388
    %1975 = vmatprep.subr.bf16.mxu0 0
    %1976 = vmatpush1.bf16.msra.mxu0 %v1389
    %1977 = vmatprep.subr.bf16.mxu0 0
    %1978 = vmatpush1.bf16.msra.mxu0 %v1390
    %1979 = vmatprep.subr.bf16.mxu0 0
    %1980 = vmatpush1.bf16.msra.mxu0 %v1391
    %1981 = vmatprep.subr.bf16.mxu0 0
    %1982 = vmatpush1.bf16.msra.mxu0 %v1392
    %1983 = vmatprep.subr.bf16.mxu0 0
    %1984 = vmatpush1.bf16.msra.mxu0 %v1393
    %1985 = vmatprep.subr.bf16.mxu0 0
    %1986 = vmatpush1.bf16.msra.mxu0 %v1394
    %1987 = vmatprep.subr.bf16.mxu0 0
    %1988 = vmatpush1.bf16.msra.mxu0 %v1395
    %1989 = vmatprep.subr.bf16.mxu0 0
    %1990 = vmatpush1.bf16.msra.mxu0 %v1396
    %1991 = vmatprep.subr.bf16.mxu0 0
    %1992 = vmatpush1.bf16.msra.mxu0 %v1397
    %1993 = vmatprep.subr.bf16.mxu0 0
    %1994 = vmatpush1.bf16.msra.mxu0 %v1398
    %1995 = vmatprep.subr.bf16.mxu0 0
    %1996 = vmatpush1.bf16.msra.mxu0 %v1399
    %1997 = vmatprep.subr.bf16.mxu0 0
    %1998 = vmatpush1.bf16.msra.mxu0 %v1400
    %1999 = vmatprep.subr.bf16.mxu0 0
    %2000 = vmatpush1.bf16.msra.mxu0 %v1401
    %2001 = vmatprep.subr.bf16.mxu0 0
    %2002 = vmatpush1.bf16.msra.mxu0 %v1402
    %2003 = vmatprep.mubr.bf16.mxu0 %v93
    %2004 = vmatmul.mubr.bf16.gmra.mrb[0].mxu0 %v92
    %v2005 = vpop.f32.mrb[0].mxu0
    %v2006 = vadd.f32 %v1965, %v2005
    %v2007 = vpop.f32.mrb[0].mxu0
    %v2008 = vpop.f32.mrb[0].mxu0
    %v2009 = vadd.f32 %v1968, %v2008
    %v2010 = vpop.f32.mrb[0].mxu0
    %2011 = vdwg.mxu0
    %2012 = vmatprep.subr.bf16.mxu0 0
    %2013 = vmatpush1.bf16.msra.mxu0 %v1403
    %2014 = vmatprep.subr.bf16.mxu0 0
    %2015 = vmatpush1.bf16.msra.mxu0 %v1404
    %2016 = vmatprep.subr.bf16.mxu0 0
    %2017 = vmatpush1.bf16.msra.mxu0 %v1405
    %2018 = vmatprep.subr.bf16.mxu0 0
    %2019 = vmatpush1.bf16.msra.mxu0 %v1406
    %2020 = vmatprep.subr.bf16.mxu0 0
    %2021 = vmatpush1.bf16.msra.mxu0 %v1407
    %2022 = vmatprep.subr.bf16.mxu0 0
    %2023 = vmatpush1.bf16.msra.mxu0 %v1408
    %2024 = vmatprep.subr.bf16.mxu0 0
    %2025 = vmatpush1.bf16.msra.mxu0 %v1409
    %2026 = vmatprep.subr.bf16.mxu0 0
    %2027 = vmatpush1.bf16.msra.mxu0 %v1410
    %2028 = vmatprep.subr.bf16.mxu0 0
    %2029 = vmatpush1.bf16.msra.mxu0 %v1411
    %2030 = vmatprep.subr.bf16.mxu0 0
    %2031 = vmatpush1.bf16.msra.mxu0 %v1412
    %2032 = vmatprep.subr.bf16.mxu0 0
    %2033 = vmatpush1.bf16.msra.mxu0 %v1413
    %2034 = vmatprep.subr.bf16.mxu0 0
    %2035 = vmatpush1.bf16.msra.mxu0 %v1414
    %2036 = vmatprep.subr.bf16.mxu0 0
    %2037 = vmatpush1.bf16.msra.mxu0 %v1415
    %2038 = vmatprep.subr.bf16.mxu0 0
    %2039 = vmatpush1.bf16.msra.mxu0 %v1416
    %2040 = vmatprep.subr.bf16.mxu0 0
    %2041 = vmatpush1.bf16.msra.mxu0 %v1417
    %2042 = vmatprep.subr.bf16.mxu0 0
    %2043 = vmatpush1.bf16.msra.mxu0 %v1418
    %2044 = vmatprep.mubr.bf16.mxu0 %v95
    %2045 = vmatmul.mubr.bf16.gmra.mrb[0].mxu0 %v94
    %v2046 = vpop.f32.mrb[0].mxu0
    %v2047 = vadd.f32 %v2006, %v2046
    %v2048 = vpop.f32.mrb[0].mxu0
    %v2049 = vpop.f32.mrb[0].mxu0
    %v2050 = vadd.f32 %v2009, %v2049
    %v2051 = vpop.f32.mrb[0].mxu0
    %2052 = vdwg.mxu0
    %2053 = vmatprep.subr.bf16.mxu0 0
    %2054 = vmatpush1.bf16.msra.mxu0 %v1419
    %2055 = vmatprep.subr.bf16.mxu0 0
    %2056 = vmatpush1.bf16.msra.mxu0 %v1420
    %2057 = vmatprep.subr.bf16.mxu0 0
    %2058 = vmatpush1.bf16.msra.mxu0 %v1421
    %2059 = vmatprep.subr.bf16.mxu0 0
    %2060 = vmatpush1.bf16.msra.mxu0 %v1422
    %2061 = vmatprep.subr.bf16.mxu0 0
    %2062 = vmatpush1.bf16.msra.mxu0 %v1423
    %2063 = vmatprep.subr.bf16.mxu0 0
    %2064 = vmatpush1.bf16.msra.mxu0 %v1424
    %2065 = vmatprep.subr.bf16.mxu0 0
    %2066 = vmatpush1.bf16.msra.mxu0 %v1425
    %2067 = vmatprep.subr.bf16.mxu0 0
    %2068 = vmatpush1.bf16.msra.mxu0 %v1426
    %2069 = vmatprep.subr.bf16.mxu0 0
    %2070 = vmatpush1.bf16.msra.mxu0 %v1427
    %2071 = vmatprep.subr.bf16.mxu0 0
    %2072 = vmatpush1.bf16.msra.mxu0 %v1428
    %2073 = vmatprep.subr.bf16.mxu0 0
    %2074 = vmatpush1.bf16.msra.mxu0 %v1429
    %2075 = vmatprep.subr.bf16.mxu0 0
    %2076 = vmatpush1.bf16.msra.mxu0 %v1430
    %2077 = vmatprep.subr.bf16.mxu0 0
    %2078 = vmatpush1.bf16.msra.mxu0 %v1431
    %2079 = vmatprep.subr.bf16.mxu0 0
    %2080 = vmatpush1.bf16.msra.mxu0 %v1432
    %2081 = vmatprep.subr.bf16.mxu0 0
    %2082 = vmatpush1.bf16.msra.mxu0 %v1433
    %2083 = vmatprep.subr.bf16.mxu0 0
    %2084 = vmatpush1.bf16.msra.mxu0 %v1434
    %2085 = vmatprep.mubr.bf16.mxu0 %v97
    %2086 = vmatmul.mubr.bf16.gmra.mrb[0].mxu0 %v96
    %v2087 = vpop.f32.mrb[0].mxu0
    %v2088 = vadd.f32 %v2047, %v2087
    %v2089 = vpop.f32.mrb[0].mxu0
    %v2090 = vpop.f32.mrb[0].mxu0
    %v2091 = vadd.f32 %v2050, %v2090
    %v2092 = vpop.f32.mrb[0].mxu0
    %2093 = vdwg.mxu0
    %2094 = vmatprep.subr.bf16.mxu0 0
    %2095 = vmatpush1.bf16.msra.mxu0 %v1435
    %2096 = vmatprep.subr.bf16.mxu0 0
    %2097 = vmatpush1.bf16.msra.mxu0 %v1436
    %2098 = vmatprep.subr.bf16.mxu0 0
    %2099 = vmatpush1.bf16.msra.mxu0 %v1437
    %2100 = vmatprep.subr.bf16.mxu0 0
    %2101 = vmatpush1.bf16.msra.mxu0 %v1438
    %2102 = vmatprep.subr.bf16.mxu0 0
    %2103 = vmatpush1.bf16.msra.mxu0 %v1439
    %2104 = vmatprep.subr.bf16.mxu0 0
    %2105 = vmatpush1.bf16.msra.mxu0 %v1440
    %2106 = vmatprep.subr.bf16.mxu0 0
    %2107 = vmatpush1.bf16.msra.mxu0 %v1441
    %2108 = vmatprep.subr.bf16.mxu0 0
    %2109 = vmatpush1.bf16.msra.mxu0 %v1442
    %2110 = vmatprep.subr.bf16.mxu0 0
    %2111 = vmatpush1.bf16.msra.mxu0 %v1443
    %2112 = vmatprep.subr.bf16.mxu0 0
    %2113 = vmatpush1.bf16.msra.mxu0 %v1444
    %2114 = vmatprep.subr.bf16.mxu0 0
    %2115 = vmatpush1.bf16.msra.mxu0 %v1445
    %2116 = vmatprep.subr.bf16.mxu0 0
    %2117 = vmatpush1.bf16.msra.mxu0 %v1446
    %2118 = vmatprep.subr.bf16.mxu0 0
    %2119 = vmatpush1.bf16.msra.mxu0 %v1447
    %2120 = vmatprep.subr.bf16.mxu0 0
    %2121 = vmatpush1.bf16.msra.mxu0 %v1448
    %2122 = vmatprep.subr.bf16.mxu0 0
    %2123 = vmatpush1.bf16.msra.mxu0 %v1449
    %2124 = vmatprep.subr.bf16.mxu0 0
    %2125 = vmatpush1.bf16.msra.mxu0 %v1450
    %2126 = vmatprep.mubr.bf16.mxu0 %v99
    %2127 = vmatmul.mubr.bf16.gmra.mrb[0].mxu0 %v98
    %v2128 = vpop.f32.mrb[0].mxu0
    %v2129 = vadd.f32 %v2088, %v2128
    %v2130 = vpop.f32.mrb[0].mxu0
    %v2131 = vpop.f32.mrb[0].mxu0
    %v2132 = vadd.f32 %v2091, %v2131
    %v2133 = vpop.f32.mrb[0].mxu0
    %2134 = vdwg.mxu0
    %v2135 = vtanh.pop %v2129
    %v2136 = vtanh.pop %v2132
    %v2137 = vld [vmem:[%s3] sm:$0xff]
    %v2138 = vld [vmem:[%s3 + $0x8] sm:$0xff]
    %v2139 = vld [vmem:[%s3 + $0x10] sm:$0xff]
    %v2140 = vld [vmem:[%s3 + $0x18] sm:$0xff]
    %v2141 = vld [vmem:[%s3 + $0x20] sm:$0xff]
    %v2142 = vld [vmem:[%s3 + $0x28] sm:$0xff]
    %v2143 = vld [vmem:[%s3 + $0x30] sm:$0xff]
    %v2144 = vld [vmem:[%s3 + $0x38] sm:$0xff]
    %v2145 = vld [vmem:[%s4] sm:$0x1]
    %v2147 = vlaneseq
    %v2148 = vshrl.u32 %v2147, 7
    %v2149 = vsub.s32 0, %v2148
    %v2150 = vrot.slane %v2145, %v2149
    %vm2152 = vcmask 523264
    %v2154 = vsel %vm2152, %v2135, 0
    %v2157 = vsel %vm2152, %v2136, 0
    %2159 = vmatprep.subr.mxu0 0.0
    %2160 = vmatpush1.msra.mxu0 %v2137
    %2161 = vmatprep.subr.mxu0 0.0
    %2162 = vmatpush1.msra.mxu0 %v2138
    %2163 = vmatprep.subr.mxu0 0.0
    %2164 = vmatpush1.msra.mxu0 %v2139
    %2165 = vmatprep.subr.mxu0 0.0
    %2166 = vmatpush1.msra.mxu0 %v2140
    %2167 = vmatprep.subr.mxu0 0.0
    %2168 = vmatpush1.msra.mxu0 %v2141
    %2169 = vmatprep.subr.mxu0 0.0
    %2170 = vmatpush1.msra.mxu0 %v2142
    %2171 = vmatprep.subr.mxu0 0.0
    %2172 = vmatpush1.msra.mxu0 %v2143
    %2173 = vmatprep.subr.mxu0 0.0
    %2174 = vmatpush1.msra.mxu0 %v2144
    %2175 = vmatprep.subr.mxu0 0.0
    %2176 = vmatpush1.msra.mxu0 0.0
    %2177 = vmatprep.subr.mxu0 0.0
    %2178 = vmatpush1.msra.mxu0 0.0
    %2179 = vmatprep.subr.mxu0 0.0
    %2180 = vmatpush1.msra.mxu0 0.0
    %2181 = vmatprep.subr.mxu0 0.0
    %2182 = vmatpush1.msra.mxu0 0.0
    %2183 = vmatprep.subr.mxu0 0.0
    %2184 = vmatpush1.msra.mxu0 0.0
    %2185 = vmatprep.subr.mxu0 0.0
    %2186 = vmatpush1.msra.mxu0 0.0
    %2187 = vmatprep.subr.mxu0 0.0
    %2188 = vmatpush1.msra.mxu0 0.0
    %2189 = vmatprep.subr.mxu0 0.0
    %2190 = vmatpush1.msra.mxu0 0.0
    %2191 = vmatprep.subr.mxu0 0.0
    %2192 = vmatpush1.msra.mxu0 0.0
    %2193 = vmatprep.subr.mxu0 0.0
    %2194 = vmatpush1.msra.mxu0 0.0
    %2195 = vmatprep.subr.mxu0 0.0
    %2196 = vmatpush1.msra.mxu0 0.0
    %2197 = vmatprep.subr.mxu0 0.0
    %2198 = vmatpush1.msra.mxu0 0.0
    %2199 = vmatprep.subr.mxu0 0.0
    %2200 = vmatpush1.msra.mxu0 0.0
    %2201 = vmatprep.subr.mxu0 0.0
    %2202 = vmatpush1.msra.mxu0 0.0
    %2203 = vmatprep.subr.mxu0 0.0
    %2204 = vmatpush1.msra.mxu0 0.0
    %2205 = vmatprep.subr.mxu0 0.0
    %2206 = vmatpush1.msra.mxu0 0.0
    %2207 = vmatprep.subr.mxu0 0.0
    %2208 = vmatpush1.msra.mxu0 0.0
    %2209 = vmatprep.subr.mxu0 0.0
    %2210 = vmatpush1.msra.mxu0 0.0
    %2211 = vmatprep.subr.mxu0 0.0
    %2212 = vmatpush1.msra.mxu0 0.0
    %2213 = vmatprep.subr.mxu0 0.0
    %2214 = vmatpush1.msra.mxu0 0.0
    %2215 = vmatprep.subr.mxu0 0.0
    %2216 = vmatpush1.msra.mxu0 0.0
    %2217 = vmatprep.subr.mxu0 0.0
    %2218 = vmatpush1.msra.mxu0 0.0
    %2219 = vmatprep.subr.mxu0 0.0
    %2220 = vmatpush1.msra.mxu0 0.0
    %2221 = vmatprep.subr.mxu0 0.0
    %2222 = vmatpush1.msra.mxu0 0.0
    %2223 = vmatprep.mubr.f32.mxu0 0.0
    %2224 = vmatmul.mubr.f32.gmra.mrb[0].mxu0 %v2154
    %v2225 = vpop.f32.mrb[0].mxu0
    %v2226 = vadd.f32 %v2150, %v2225
    %v2227 = vpop.f32.mrb[0].mxu0
    %2228 = vmatprep.mubr.f32.mxu0 0.0
    %2229 = vmatmul.mubr.f32.gmra.mrb[0].mxu0 %v2157
    %v2230 = vpop.f32.mrb[0].mxu0
    %v2231 = vadd.f32 %v2150, %v2230
    %v2232 = vpop.f32.mrb[0].mxu0
    %2233 = vdwg.mxu0
    %v2234 = vmax.f32 %v2226, 0.0
    %v2235 = vmax.f32 %v2231, 0.0
    %v2236 = vld [vmem:[%s5] sm:$0xff]
    %v2237 = vld [vmem:[%s5 + $0x8] sm:$0xff]
    %v2238 = vld [vmem:[%s5 + $0x10] sm:$0xff]
    %v2239 = vld [vmem:[%s5 + $0x18] sm:$0xff]
    %v2240 = vld [vmem:[%s6] sm:$0x1]
    %v2242 = vlaneseq
    %v2243 = vshrl.u32 %v2242, 7
    %v2244 = vsub.s32 0, %v2243
    %v2245 = vrot.slane %v2240, %v2244
    %vm2247 = vcmask 261120
    %v2249 = vsel %vm2247, %v2234, 0
    %v2252 = vsel %vm2247, %v2235, 0
    %2254 = vmatprep.subr.mxu0 0.0
    %2255 = vmatpush1.msra.mxu0 %v2236
    %2256 = vmatprep.subr.mxu0 0.0
    %2257 = vmatpush1.msra.mxu0 %v2237
    %2258 = vmatprep.subr.mxu0 0.0
    %2259 = vmatpush1.msra.mxu0 %v2238
    %2260 = vmatprep.subr.mxu0 0.0
    %2261 = vmatpush1.msra.mxu0 %v2239
    %2262 = vmatprep.subr.mxu0 0.0
    %2263 = vmatpush1.msra.mxu0 0.0
    %2264 = vmatprep.subr.mxu0 0.0
    %2265 = vmatpush1.msra.mxu0 0.0
    %2266 = vmatprep.subr.mxu0 0.0
    %2267 = vmatpush1.msra.mxu0 0.0
    %2268 = vmatprep.subr.mxu0 0.0
    %2269 = vmatpush1.msra.mxu0 0.0
    %2270 = vmatprep.subr.mxu0 0.0
    %2271 = vmatpush1.msra.mxu0 0.0
    %2272 = vmatprep.subr.mxu0 0.0
    %2273 = vmatpush1.msra.mxu0 0.0
    %2274 = vmatprep.subr.mxu0 0.0
    %2275 = vmatpush1.msra.mxu0 0.0
    %2276 = vmatprep.subr.mxu0 0.0
    %2277 = vmatpush1.msra.mxu0 0.0
    %2278 = vmatprep.subr.mxu0 0.0
    %2279 = vmatpush1.msra.mxu0 0.0
    %2280 = vmatprep.subr.mxu0 0.0
    %2281 = vmatpush1.msra.mxu0 0.0
    %2282 = vmatprep.subr.mxu0 0.0
    %2283 = vmatpush1.msra.mxu0 0.0
    %2284 = vmatprep.subr.mxu0 0.0
    %2285 = vmatpush1.msra.mxu0 0.0
    %2286 = vmatprep.subr.mxu0 0.0
    %2287 = vmatpush1.msra.mxu0 0.0
    %2288 = vmatprep.subr.mxu0 0.0
    %2289 = vmatpush1.msra.mxu0 0.0
    %2290 = vmatprep.subr.mxu0 0.0
    %2291 = vmatpush1.msra.mxu0 0.0
    %2292 = vmatprep.subr.mxu0 0.0
    %2293 = vmatpush1.msra.mxu0 0.0
    %2294 = vmatprep.subr.mxu0 0.0
    %2295 = vmatpush1.msra.mxu0 0.0
    %2296 = vmatprep.subr.mxu0 0.0
    %2297 = vmatpush1.msra.mxu0 0.0
    %2298 = vmatprep.subr.mxu0 0.0
    %2299 = vmatpush1.msra.mxu0 0.0
    %2300 = vmatprep.subr.mxu0 0.0
    %2301 = vmatpush1.msra.mxu0 0.0
    %2302 = vmatprep.subr.mxu0 0.0
    %2303 = vmatpush1.msra.mxu0 0.0
    %2304 = vmatprep.subr.mxu0 0.0
    %2305 = vmatpush1.msra.mxu0 0.0
    %2306 = vmatprep.subr.mxu0 0.0
    %2307 = vmatpush1.msra.mxu0 0.0
    %2308 = vmatprep.subr.mxu0 0.0
    %2309 = vmatpush1.msra.mxu0 0.0
    %2310 = vmatprep.subr.mxu0 0.0
    %2311 = vmatpush1.msra.mxu0 0.0
    %2312 = vmatprep.subr.mxu0 0.0
    %2313 = vmatpush1.msra.mxu0 0.0
    %2314 = vmatprep.subr.mxu0 0.0
    %2315 = vmatpush1.msra.mxu0 0.0
    %2316 = vmatprep.subr.mxu0 0.0
    %2317 = vmatpush1.msra.mxu0 0.0
    %2318 = vmatprep.mubr.f32.mxu0 0.0
    %2319 = vmatmul.mubr.f32.gmra.mrb[0].mxu0 %v2249
    %v2320 = vpop.f32.mrb[0].mxu0
    %v2321 = vadd.f32 %v2245, %v2320
    %v2322 = vpop.f32.mrb[0].mxu0
    %2323 = vmatprep.mubr.f32.mxu0 0.0
    %2324 = vmatmul.mubr.f32.gmra.mrb[0].mxu0 %v2252
    %v2325 = vpop.f32.mrb[0].mxu0
    %v2326 = vadd.f32 %v2245, %v2325
    %v2327 = vpop.f32.mrb[0].mxu0
    %2328 = vdwg.mxu0
    %2329 = vmax.xlane.f32.xlu0 %v2321
    %v2330 = vpop.xlane.xlu0 %2329
    %2331 = vmax.xlane.f32.xlu0 %v2326
    %v2332 = vpop.xlane.xlu0 %2331
    %v2333 = vsub.f32 %v2321, %v2330
    %v2334 = vsub.f32 %v2326, %v2332
    %v2335 = vmul.f32 %v2333, 1.442695
    %v2336 = vpow.pop %v2335
    %v2337 = vmul.f32 %v2334, 1.442695
    %v2338 = vpow.pop %v2337
    %2339 = vadd.xlane.f32.xlu0 %v2336
    %v2340 = vpop.xlane.xlu0 %2339
    %2341 = vadd.xlane.f32.xlu0 %v2338
    %v2342 = vpop.xlane.xlu0 %2341
    %v2343 = vrcp.pop %v2340
    %v2344 = vmul.f32 %v2336, %v2343
    %v2345 = vrcp.pop %v2342
    %v2346 = vmul.f32 %v2338, %v2345
    %2347 = vst [vmem:[#allocation2] sm:$0xff] %v2344
    %2348 = vst [vmem:[#allocation2 + $0x8] sm:$0xff] %v2346
    // Predicated region
    $region30: #{tpu_custom_call.1} parent=1 // pred_check
      _
    $region31: #{tpu_custom_call.1} parent=1 // pred_check_branch
      %2350 = sbr.rel (0) target = $region33
    $region32: #{tpu_custom_call.1} parent=1 // pred_region
      %s2352 = ssub.s32 256, 256
      %2353 = vsyncadd [#allocation3], %s2352
      %s2354 = sshll.u32 [#allocation2], 4
      %s2355 = int_to_ptr.vmem [resolvable:$true] %s2354
      %2360 = dma.vmem_to_hbm [thread:$0]  %s2355, 256, %s7, [#allocation3], 128, 128, 8
    $region33: #{tpu_custom_call.1} parent=1 // pred_fallthru
      _
    // Predicated region
    $region34: #{tpu_custom_call.1} parent=1 // pred_check
      _
    $region35: #{tpu_custom_call.1} parent=1 // pred_check_branch
      %2362 = sbr.rel (0) target = $region37
    $region36: #{tpu_custom_call.1} parent=1 // pred_region
      %2363 = dma.done [#allocation3], 256
    $region37: #{tpu_custom_call.1} parent=1 // pred_fallthru
      _
    %2364 = vsyncpa [#allocation3], 1

</llo_original>
